<compile_context>
chip_gen: v5e
topology: v5e:2x2
jax: 0.10.0
libtpu: 0.0.40
codegen_flags: <defaults>
</compile_context>

<pallas_src>
import functools

import jax
import jax.numpy as jnp
from jax.experimental import pallas as pl
from jax.experimental.pallas import tpu as pltpu


# ----------------------------------------------------------------------------
# Kernel A: gather embeddings, hidden layer, per-vocab-tile logits + online lse
# ----------------------------------------------------------------------------
def _logits_lse_kernel(n_ctx,
                       idx_ref,      # SMEM scalar prefetch: (2C,) int32 word ids
                       table_hbm,    # (V, E) f32 embedding table, stays in HBM
                       w1_ref,       # (2C, E, H) bf16  linear_1 weight (transposed)
                       b1_ref,       # (1, H)  f32      linear_1 bias
                       w2_ref,       # (H, TV) bf16     linear_2 weight tile
                       b2_ref,       # (1, TV) f32      linear_2 bias tile
                       logits_ref,   # (1, TV) f32      logits tile (output)
                       lse_ref,      # (1, 1)  f32      logsumexp   (output)
                       rows_vmem,    # (2C, E) f32      gathered embedding rows
                       hid_vmem,     # (1, H)  bf16     cached hidden activation
                       m_scr,        # (1, 1)  f32      running max
                       s_scr,        # (1, 1)  f32      running sum
                       sem):         # DMA sems, (2C,)
    j = pl.program_id(0)

    @pl.when(j == 0)
    def _prologue():
        # Gather only the 2C needed rows from the HBM table into VMEM.
        copies = []
        for c in range(n_ctx):
            cp = pltpu.make_async_copy(
                table_hbm.at[pl.ds(idx_ref[c], 1), :],
                rows_vmem.at[pl.ds(c, 1), :],
                sem.at[c])
            cp.start()
            copies.append(cp)
        for cp in copies:
            cp.wait()

        # hidden pre-activation: b1 + sum_c emb[idx[c]] @ W1[c]  (f32 accumulate)
        acc = b1_ref[...]                                          # (1, H) f32
        for c in range(n_ctx):                                     # small static loop,
            row = rows_vmem[pl.ds(c, 1), :].astype(jnp.bfloat16)   # fed from the slab
            acc = acc + jnp.dot(row, w1_ref[c],
                                preferred_element_type=jnp.float32)
        hid_vmem[...] = jnp.maximum(acc, 0.0).astype(jnp.bfloat16)  # ReLU, cached

        m_scr[...] = jnp.full(m_scr.shape, -jnp.inf, m_scr.dtype)
        s_scr[...] = jnp.zeros(s_scr.shape, s_scr.dtype)

    # Per-tile logits: (1, H) bf16 @ (H, TV) bf16 -> f32, + bias.
    logits = jnp.dot(hid_vmem[...], w2_ref[...],
                     preferred_element_type=jnp.float32) + b2_ref[...]
    logits_ref[...] = logits

    # Online logsumexp across vocab tiles (all in f32).
    tile_max = jnp.max(logits, axis=-1, keepdims=True)             # (1, 1)
    m_new = jnp.maximum(m_scr[...], tile_max)
    s_scr[...] = (s_scr[...] * jnp.exp(m_scr[...] - m_new)
                  + jnp.sum(jnp.exp(logits - m_new), axis=-1, keepdims=True))
    m_scr[...] = m_new

    @pl.when(j == pl.num_programs(0) - 1)
    def _epilogue():
        lse_ref[...] = m_scr[...] + jnp.log(s_scr[...])


# ----------------------------------------------------------------------------
# Kernel B: finalize log_softmax (subtract the global logsumexp), tiled over V
# ----------------------------------------------------------------------------
def _finalize_kernel(logits_ref, lse_ref, out_ref):
    out_ref[...] = logits_ref[...] - lse_ref[...]


# ----------------------------------------------------------------------------
# Host-side parameter preparation (done ONCE, not per forward call)
# ----------------------------------------------------------------------------
def prepare_params(emb_table, w1, b1, w2, b2, n_ctx):
    """w1: (2C*E, H) = linear_1.weight.T ; w2: (H, V) = linear_2.weight.T."""
    vocab, emb = emb_table.shape
    in1, hid = w1.shape
    assert in1 == n_ctx * emb
    assert w2.shape == (hid, vocab)
    return dict(
        table=emb_table.astype(jnp.float32),                       # (V, E)
        w1=w1.astype(jnp.bfloat16).reshape(n_ctx, emb, hid),        # (2C, E, H)
        b1=b1.reshape(1, hid).astype(jnp.float32),                  # (1, H)
        w2=w2.astype(jnp.bfloat16),                                 # (H, V)
        b2=b2.reshape(1, vocab).astype(jnp.float32),                # (1, V)
    )


def _pick_vocab_tile(vocab, requested):
    if requested is not None:
        assert vocab % requested == 0 and requested % 128 == 0
        return requested
    for tv in (2048, 1024, 512, 256, 128):
        if vocab % tv == 0:
            return tv
    return vocab  # fallback: single full-width block


# ----------------------------------------------------------------------------
# Forward pass
# ----------------------------------------------------------------------------
def word2vec_forward(context_words, params, *, vocab_tile=None):
    """context_words: (2C,) int32.  Returns (1, V) f32 log-probabilities."""
    table, w1, b1, w2, b2 = (params["table"], params["w1"], params["b1"],
                             params["w2"], params["b2"])
    n_ctx, emb, hid = w1.shape
    vocab = table.shape[0]
    tv = _pick_vocab_tile(vocab, vocab_tile)
    n_tiles = vocab // tv

    kern = functools.partial(_logits_lse_kernel, n_ctx)

    grid_spec = pltpu.PrefetchScalarGridSpec(
        num_scalar_prefetch=1,
        grid=(n_tiles,),
        in_specs=[
            pl.BlockSpec(memory_space=pl.ANY),                          # table (HBM)
            pl.BlockSpec((n_ctx, emb, hid), lambda j, idx: (0, 0, 0)),  # w1
            pl.BlockSpec((1, hid),          lambda j, idx: (0, 0)),     # b1
            pl.BlockSpec((hid, tv),         lambda j, idx: (0, j)),     # w2 tile
            pl.BlockSpec((1, tv),           lambda j, idx: (0, j)),     # b2 tile
        ],
        out_specs=[
            pl.BlockSpec((1, tv), lambda j, idx: (0, j)),               # logits tile
            pl.BlockSpec((1, 1),  lambda j, idx: (0, 0)),               # lse
        ],
        scratch_shapes=[
            pltpu.VMEM((n_ctx, emb), jnp.float32),   # gathered embedding rows
            pltpu.VMEM((1, hid), jnp.bfloat16),      # cached hidden
            pltpu.VMEM((1, 1), jnp.float32),         # running max
            pltpu.VMEM((1, 1), jnp.float32),         # running sum
            pltpu.SemaphoreType.DMA((n_ctx,)),
        ],
    )

    # Vocab axis carries the online-lse accumulator + cached hidden -> arbitrary.
    logits, lse = pl.pallas_call(
        kern,
        out_shape=(jax.ShapeDtypeStruct((1, vocab), jnp.float32),
                   jax.ShapeDtypeStruct((1, 1), jnp.float32)),
        grid_spec=grid_spec,
        compiler_params=pltpu.CompilerParams(
            dimension_semantics=("arbitrary",)),
    )(context_words, table, w1, b1, w2, b2)

    out = pl.pallas_call(
        _finalize_kernel,
        out_shape=jax.ShapeDtypeStruct((1, vocab), jnp.float32),
        grid=(n_tiles,),
        in_specs=[pl.BlockSpec((1, tv), lambda j: (0, j)),
                  pl.BlockSpec((1, 1),  lambda j: (0, 0))],
        out_specs=pl.BlockSpec((1, tv), lambda j: (0, j)),
        compiler_params=pltpu.CompilerParams(
            dimension_semantics=("parallel",)),
    )(logits, lse)
    return out


# ----------------------------------------------------------------------------
# References
# ----------------------------------------------------------------------------
def _reference_f32(idx, table, w1, b1, w2, b2):
    emb = table[idx].reshape(1, -1)
    hidden = jnp.maximum(emb @ w1 + b1, 0.0)
    logits = hidden @ w2 + b2
    return jax.nn.log_softmax(logits, axis=1)


def _reference_bf16(idx, table, w1, b1, w2, b2):
    """Precision-matched reference (bf16 MXU inputs, f32 accumulation)."""
    n_ctx = idx.shape[0]
    vocab, emb = table.shape
    hid = w1.shape[1]
    rows = table[idx]                                               # (2C, E) f32
    w1r = w1.astype(jnp.bfloat16).reshape(n_ctx, emb, hid)
    acc = b1.reshape(1, hid)
    for c in range(n_ctx):
        acc = acc + jnp.dot(rows[c:c + 1].astype(jnp.bfloat16), w1r[c],
                            preferred_element_type=jnp.float32)
    hidden = jnp.maximum(acc, 0.0).astype(jnp.bfloat16)
    logits = jnp.dot(hidden, w2.astype(jnp.bfloat16),
                     preferred_element_type=jnp.float32) + b2.reshape(1, vocab)
    return jax.nn.log_softmax(logits, axis=1)


if __name__ == "__main__":
    # Small, module-consistent shapes (multiple vocab tiles to exercise the
    # streamed-w2 / online-lse path).
    context_size = 4            # -> 2*context_size = 8 context words
    emb_size = 32
    vocab_size = 512
    hidden_size = 128
    n_ctx = 2 * context_size

    key = jax.random.PRNGKey(0)
    k_emb, k_w1, k_b1, k_w2, k_b2, k_idx = jax.random.split(key, 6)

    emb_table = jax.random.normal(k_emb, (vocab_size, emb_size), jnp.float32)
    in1 = n_ctx * emb_size
    w1 = jax.random.uniform(k_w1, (in1, hidden_size), jnp.float32,
                            -1.0 / jnp.sqrt(in1), 1.0 / jnp.sqrt(in1))
    b1 = jax.random.uniform(k_b1, (hidden_size,), jnp.float32,
                            -1.0 / jnp.sqrt(in1), 1.0 / jnp.sqrt(in1))
    w2 = jax.random.uniform(k_w2, (hidden_size, vocab_size), jnp.float32,
                            -1.0 / jnp.sqrt(hidden_size), 1.0 / jnp.sqrt(hidden_size))
    b2 = jax.random.uniform(k_b2, (vocab_size,), jnp.float32,
                            -1.0 / jnp.sqrt(hidden_size), 1.0 / jnp.sqrt(hidden_size))

    context_words = jax.random.randint(k_idx, (n_ctx,), 0, vocab_size, jnp.int32)

    params = prepare_params(emb_table, w1, b1, w2, b2, n_ctx)

    out = word2vec_forward(context_words, params, vocab_tile=128)   # 4 vocab tiles
    out = jax.block_until_ready(out)

    ref_matched = _reference_bf16(context_words, emb_table, w1, b1, w2, b2)
    ref_f32 = _reference_f32(context_words, emb_table, w1, b1, w2, b2)

    assert out.shape == (1, vocab_size)
    assert jnp.allclose(out, ref_matched, atol=1e-3, rtol=1e-3)
    assert jnp.allclose(out, ref_f32, atol=5e-2)

    print("KERNEL_OK")
</pallas_src>

<mosaic_0001>
module attributes {stable_mosaic.version = 11 : i64} {
  func.func @_logits_lse_kernel(%arg0: i32, %arg1: memref<8xi32, #tpu.memory_space<smem>>, %arg2: memref<512x32xf32, #tpu.memory_space<any>>, %arg3: memref<8x32x128xbf16, #tpu.memory_space<vmem>>, %arg4: memref<1x128xf32, #tpu.memory_space<vmem>>, %arg5: memref<128x128xbf16, #tpu.memory_space<vmem>>, %arg6: memref<1x128xf32, #tpu.memory_space<vmem>>, %arg7: memref<1x128xf32, #tpu.memory_space<vmem>>, %arg8: memref<1x1xf32, #tpu.memory_space<vmem>>, %arg9: memref<8x32xf32, #tpu.memory_space<vmem>>, %arg10: memref<1x128xbf16, #tpu.memory_space<vmem>>, %arg11: memref<1x1xf32, #tpu.memory_space<vmem>>, %arg12: memref<1x1xf32, #tpu.memory_space<vmem>>, %arg13: memref<8x!tpu.dma_semaphore, #tpu.memory_space<semaphore_mem>>) attributes {dimension_semantics = [#tpu.dimension_semantics<arbitrary>], iteration_bounds = array<i64: 4>, scalar_prefetch = 1 : i64, scratch_operands = 5 : i64, tpu.core_type = #tpu.core_type<tc>, window_params = [{}, {pipeline_mode = #tpu.pipeline_mode<synchronous>, transform_indices = @transform_1, window_bounds = array<i64: 8, 32, 128>}, {pipeline_mode = #tpu.pipeline_mode<synchronous>, transform_indices = @transform_2, window_bounds = array<i64: 1, 128>}, {transform_indices = @transform_3, window_bounds = array<i64: 128, 128>}, {transform_indices = @transform_4, window_bounds = array<i64: 1, 128>}, {transform_indices = @transform_5, window_bounds = array<i64: 1, 128>}, {pipeline_mode = #tpu.pipeline_mode<synchronous>, transform_indices = @transform_6, window_bounds = array<i64: 1, 1>}]} {
    %c0_i32 = arith.constant 0 : i32
    %0 = arith.cmpi eq, %arg0, %c0_i32 : i32
    %1 = arith.extui %0 : i1 to i32
    %c0_i32_0 = arith.constant 0 : i32
    %2 = arith.cmpi ne, %1, %c0_i32_0 : i32
    scf.if %2 {
      %c0_21 = arith.constant 0 : index
      %29 = memref.load %arg1[%c0_21] : memref<8xi32, #tpu.memory_space<smem>>
      %c0_i32_22 = arith.constant 0 : i32
      %c0_i32_23 = arith.constant 0 : i32
      %30 = tpu.memref_slice %arg2[%29, %c0_i32_23] : memref<512x32xf32, #tpu.memory_space<any>> -> memref<1x32xf32, #tpu.memory_space<any>>
      %c0_i32_24 = arith.constant 0 : i32
      %c0_i32_25 = arith.constant 0 : i32
      %31 = tpu.memref_slice %arg9[%c0_i32_24, %c0_i32_25] : memref<8x32xf32, #tpu.memory_space<vmem>> -> memref<1x32xf32, #tpu.memory_space<vmem>>
      %32 = tpu.memref_slice %arg13[%c0_i32_22] : memref<8x!tpu.dma_semaphore, #tpu.memory_space<semaphore_mem>> -> memref<1x!tpu.dma_semaphore, #tpu.memory_space<semaphore_mem>>
      %33 = tpu.memref_squeeze %32 : memref<1x!tpu.dma_semaphore, #tpu.memory_space<semaphore_mem>> -> memref<!tpu.dma_semaphore, #tpu.memory_space<semaphore_mem>>
      tpu.enqueue_dma source(%30 : memref<1x32xf32, #tpu.memory_space<any>>) target(%31 : memref<1x32xf32, #tpu.memory_space<vmem>>) target_semaphore(%33 : memref<!tpu.dma_semaphore, #tpu.memory_space<semaphore_mem>>)
      %c1 = arith.constant 1 : index
      %34 = memref.load %arg1[%c1] : memref<8xi32, #tpu.memory_space<smem>>
      %c1_i32 = arith.constant 1 : i32
      %c0_i32_26 = arith.constant 0 : i32
      %35 = tpu.memref_slice %arg2[%34, %c0_i32_26] : memref<512x32xf32, #tpu.memory_space<any>> -> memref<1x32xf32, #tpu.memory_space<any>>
      %c1_i32_27 = arith.constant 1 : i32
      %c0_i32_28 = arith.constant 0 : i32
      %36 = tpu.memref_slice %arg9[%c1_i32_27, %c0_i32_28] : memref<8x32xf32, #tpu.memory_space<vmem>> -> memref<1x32xf32, #tpu.memory_space<vmem>>
      %37 = tpu.memref_slice %arg13[%c1_i32] : memref<8x!tpu.dma_semaphore, #tpu.memory_space<semaphore_mem>> -> memref<1x!tpu.dma_semaphore, #tpu.memory_space<semaphore_mem>>
      %38 = tpu.memref_squeeze %37 : memref<1x!tpu.dma_semaphore, #tpu.memory_space<semaphore_mem>> -> memref<!tpu.dma_semaphore, #tpu.memory_space<semaphore_mem>>
      tpu.enqueue_dma source(%35 : memref<1x32xf32, #tpu.memory_space<any>>) target(%36 : memref<1x32xf32, #tpu.memory_space<vmem>>) target_semaphore(%38 : memref<!tpu.dma_semaphore, #tpu.memory_space<semaphore_mem>>)
      %c2 = arith.constant 2 : index
      %39 = memref.load %arg1[%c2] : memref<8xi32, #tpu.memory_space<smem>>
      %c2_i32 = arith.constant 2 : i32
      %c0_i32_29 = arith.constant 0 : i32
      %40 = tpu.memref_slice %arg2[%39, %c0_i32_29] : memref<512x32xf32, #tpu.memory_space<any>> -> memref<1x32xf32, #tpu.memory_space<any>>
      %c2_i32_30 = arith.constant 2 : i32
      %c0_i32_31 = arith.constant 0 : i32
      %41 = tpu.memref_slice %arg9[%c2_i32_30, %c0_i32_31] : memref<8x32xf32, #tpu.memory_space<vmem>> -> memref<1x32xf32, #tpu.memory_space<vmem>>
      %42 = tpu.memref_slice %arg13[%c2_i32] : memref<8x!tpu.dma_semaphore, #tpu.memory_space<semaphore_mem>> -> memref<1x!tpu.dma_semaphore, #tpu.memory_space<semaphore_mem>>
      %43 = tpu.memref_squeeze %42 : memref<1x!tpu.dma_semaphore, #tpu.memory_space<semaphore_mem>> -> memref<!tpu.dma_semaphore, #tpu.memory_space<semaphore_mem>>
      tpu.enqueue_dma source(%40 : memref<1x32xf32, #tpu.memory_space<any>>) target(%41 : memref<1x32xf32, #tpu.memory_space<vmem>>) target_semaphore(%43 : memref<!tpu.dma_semaphore, #tpu.memory_space<semaphore_mem>>)
      %c3 = arith.constant 3 : index
      %44 = memref.load %arg1[%c3] : memref<8xi32, #tpu.memory_space<smem>>
      %c3_i32_32 = arith.constant 3 : i32
      %c0_i32_33 = arith.constant 0 : i32
      %45 = tpu.memref_slice %arg2[%44, %c0_i32_33] : memref<512x32xf32, #tpu.memory_space<any>> -> memref<1x32xf32, #tpu.memory_space<any>>
      %c3_i32_34 = arith.constant 3 : i32
      %c0_i32_35 = arith.constant 0 : i32
      %46 = tpu.memref_slice %arg9[%c3_i32_34, %c0_i32_35] : memref<8x32xf32, #tpu.memory_space<vmem>> -> memref<1x32xf32, #tpu.memory_space<vmem>>
      %47 = tpu.memref_slice %arg13[%c3_i32_32] : memref<8x!tpu.dma_semaphore, #tpu.memory_space<semaphore_mem>> -> memref<1x!tpu.dma_semaphore, #tpu.memory_space<semaphore_mem>>
      %48 = tpu.memref_squeeze %47 : memref<1x!tpu.dma_semaphore, #tpu.memory_space<semaphore_mem>> -> memref<!tpu.dma_semaphore, #tpu.memory_space<semaphore_mem>>
      tpu.enqueue_dma source(%45 : memref<1x32xf32, #tpu.memory_space<any>>) target(%46 : memref<1x32xf32, #tpu.memory_space<vmem>>) target_semaphore(%48 : memref<!tpu.dma_semaphore, #tpu.memory_space<semaphore_mem>>)
      %c4 = arith.constant 4 : index
      %49 = memref.load %arg1[%c4] : memref<8xi32, #tpu.memory_space<smem>>
      %c4_i32 = arith.constant 4 : i32
      %c0_i32_36 = arith.constant 0 : i32
      %50 = tpu.memref_slice %arg2[%49, %c0_i32_36] : memref<512x32xf32, #tpu.memory_space<any>> -> memref<1x32xf32, #tpu.memory_space<any>>
      %c4_i32_37 = arith.constant 4 : i32
      %c0_i32_38 = arith.constant 0 : i32
      %51 = tpu.memref_slice %arg9[%c4_i32_37, %c0_i32_38] : memref<8x32xf32, #tpu.memory_space<vmem>> -> memref<1x32xf32, #tpu.memory_space<vmem>>
      %52 = tpu.memref_slice %arg13[%c4_i32] : memref<8x!tpu.dma_semaphore, #tpu.memory_space<semaphore_mem>> -> memref<1x!tpu.dma_semaphore, #tpu.memory_space<semaphore_mem>>
      %53 = tpu.memref_squeeze %52 : memref<1x!tpu.dma_semaphore, #tpu.memory_space<semaphore_mem>> -> memref<!tpu.dma_semaphore, #tpu.memory_space<semaphore_mem>>
      tpu.enqueue_dma source(%50 : memref<1x32xf32, #tpu.memory_space<any>>) target(%51 : memref<1x32xf32, #tpu.memory_space<vmem>>) target_semaphore(%53 : memref<!tpu.dma_semaphore, #tpu.memory_space<semaphore_mem>>)
      %c5 = arith.constant 5 : index
      %54 = memref.load %arg1[%c5] : memref<8xi32, #tpu.memory_space<smem>>
      %c5_i32 = arith.constant 5 : i32
      %c0_i32_39 = arith.constant 0 : i32
      %55 = tpu.memref_slice %arg2[%54, %c0_i32_39] : memref<512x32xf32, #tpu.memory_space<any>> -> memref<1x32xf32, #tpu.memory_space<any>>
      %c5_i32_40 = arith.constant 5 : i32
      %c0_i32_41 = arith.constant 0 : i32
      %56 = tpu.memref_slice %arg9[%c5_i32_40, %c0_i32_41] : memref<8x32xf32, #tpu.memory_space<vmem>> -> memref<1x32xf32, #tpu.memory_space<vmem>>
      %57 = tpu.memref_slice %arg13[%c5_i32] : memref<8x!tpu.dma_semaphore, #tpu.memory_space<semaphore_mem>> -> memref<1x!tpu.dma_semaphore, #tpu.memory_space<semaphore_mem>>
      %58 = tpu.memref_squeeze %57 : memref<1x!tpu.dma_semaphore, #tpu.memory_space<semaphore_mem>> -> memref<!tpu.dma_semaphore, #tpu.memory_space<semaphore_mem>>
      tpu.enqueue_dma source(%55 : memref<1x32xf32, #tpu.memory_space<any>>) target(%56 : memref<1x32xf32, #tpu.memory_space<vmem>>) target_semaphore(%58 : memref<!tpu.dma_semaphore, #tpu.memory_space<semaphore_mem>>)
      %c6 = arith.constant 6 : index
      %59 = memref.load %arg1[%c6] : memref<8xi32, #tpu.memory_space<smem>>
      %c6_i32 = arith.constant 6 : i32
      %c0_i32_42 = arith.constant 0 : i32
      %60 = tpu.memref_slice %arg2[%59, %c0_i32_42] : memref<512x32xf32, #tpu.memory_space<any>> -> memref<1x32xf32, #tpu.memory_space<any>>
      %c6_i32_43 = arith.constant 6 : i32
      %c0_i32_44 = arith.constant 0 : i32
      %61 = tpu.memref_slice %arg9[%c6_i32_43, %c0_i32_44] : memref<8x32xf32, #tpu.memory_space<vmem>> -> memref<1x32xf32, #tpu.memory_space<vmem>>
      %62 = tpu.memref_slice %arg13[%c6_i32] : memref<8x!tpu.dma_semaphore, #tpu.memory_space<semaphore_mem>> -> memref<1x!tpu.dma_semaphore, #tpu.memory_space<semaphore_mem>>
      %63 = tpu.memref_squeeze %62 : memref<1x!tpu.dma_semaphore, #tpu.memory_space<semaphore_mem>> -> memref<!tpu.dma_semaphore, #tpu.memory_space<semaphore_mem>>
      tpu.enqueue_dma source(%60 : memref<1x32xf32, #tpu.memory_space<any>>) target(%61 : memref<1x32xf32, #tpu.memory_space<vmem>>) target_semaphore(%63 : memref<!tpu.dma_semaphore, #tpu.memory_space<semaphore_mem>>)
      %c7 = arith.constant 7 : index
      %64 = memref.load %arg1[%c7] : memref<8xi32, #tpu.memory_space<smem>>
      %c7_i32 = arith.constant 7 : i32
      %c0_i32_45 = arith.constant 0 : i32
      %65 = tpu.memref_slice %arg2[%64, %c0_i32_45] : memref<512x32xf32, #tpu.memory_space<any>> -> memref<1x32xf32, #tpu.memory_space<any>>
      %c7_i32_46 = arith.constant 7 : i32
      %c0_i32_47 = arith.constant 0 : i32
      %66 = tpu.memref_slice %arg9[%c7_i32_46, %c0_i32_47] : memref<8x32xf32, #tpu.memory_space<vmem>> -> memref<1x32xf32, #tpu.memory_space<vmem>>
      %67 = tpu.memref_slice %arg13[%c7_i32] : memref<8x!tpu.dma_semaphore, #tpu.memory_space<semaphore_mem>> -> memref<1x!tpu.dma_semaphore, #tpu.memory_space<semaphore_mem>>
      %68 = tpu.memref_squeeze %67 : memref<1x!tpu.dma_semaphore, #tpu.memory_space<semaphore_mem>> -> memref<!tpu.dma_semaphore, #tpu.memory_space<semaphore_mem>>
      tpu.enqueue_dma source(%65 : memref<1x32xf32, #tpu.memory_space<any>>) target(%66 : memref<1x32xf32, #tpu.memory_space<vmem>>) target_semaphore(%68 : memref<!tpu.dma_semaphore, #tpu.memory_space<semaphore_mem>>)
      %c0_i32_48 = arith.constant 0 : i32
      %c0_i32_49 = arith.constant 0 : i32
      %69 = tpu.memref_slice %arg2[%29, %c0_i32_49] : memref<512x32xf32, #tpu.memory_space<any>> -> memref<1x32xf32, #tpu.memory_space<any>>
      %c0_i32_50 = arith.constant 0 : i32
      %c0_i32_51 = arith.constant 0 : i32
      %70 = tpu.memref_slice %arg9[%c0_i32_50, %c0_i32_51] : memref<8x32xf32, #tpu.memory_space<vmem>> -> memref<1x32xf32, #tpu.memory_space<vmem>>
      %71 = tpu.memref_slice %arg13[%c0_i32_48] : memref<8x!tpu.dma_semaphore, #tpu.memory_space<semaphore_mem>> -> memref<1x!tpu.dma_semaphore, #tpu.memory_space<semaphore_mem>>
      %72 = tpu.memref_squeeze %71 : memref<1x!tpu.dma_semaphore, #tpu.memory_space<semaphore_mem>> -> memref<!tpu.dma_semaphore, #tpu.memory_space<semaphore_mem>>
      tpu.wait_dma2 semaphore(%72 : memref<!tpu.dma_semaphore, #tpu.memory_space<semaphore_mem>>) src(%69 : memref<1x32xf32, #tpu.memory_space<any>>) dst(%70 : memref<1x32xf32, #tpu.memory_space<vmem>>)
      %c1_i32_52 = arith.constant 1 : i32
      %c0_i32_53 = arith.constant 0 : i32
      %73 = tpu.memref_slice %arg2[%34, %c0_i32_53] : memref<512x32xf32, #tpu.memory_space<any>> -> memref<1x32xf32, #tpu.memory_space<any>>
      %c1_i32_54 = arith.constant 1 : i32
      %c0_i32_55 = arith.constant 0 : i32
      %74 = tpu.memref_slice %arg9[%c1_i32_54, %c0_i32_55] : memref<8x32xf32, #tpu.memory_space<vmem>> -> memref<1x32xf32, #tpu.memory_space<vmem>>
      %75 = tpu.memref_slice %arg13[%c1_i32_52] : memref<8x!tpu.dma_semaphore, #tpu.memory_space<semaphore_mem>> -> memref<1x!tpu.dma_semaphore, #tpu.memory_space<semaphore_mem>>
      %76 = tpu.memref_squeeze %75 : memref<1x!tpu.dma_semaphore, #tpu.memory_space<semaphore_mem>> -> memref<!tpu.dma_semaphore, #tpu.memory_space<semaphore_mem>>
      tpu.wait_dma2 semaphore(%76 : memref<!tpu.dma_semaphore, #tpu.memory_space<semaphore_mem>>) src(%73 : memref<1x32xf32, #tpu.memory_space<any>>) dst(%74 : memref<1x32xf32, #tpu.memory_space<vmem>>)
      %c2_i32_56 = arith.constant 2 : i32
      %c0_i32_57 = arith.constant 0 : i32
      %77 = tpu.memref_slice %arg2[%39, %c0_i32_57] : memref<512x32xf32, #tpu.memory_space<any>> -> memref<1x32xf32, #tpu.memory_space<any>>
      %c2_i32_58 = arith.constant 2 : i32
      %c0_i32_59 = arith.constant 0 : i32
      %78 = tpu.memref_slice %arg9[%c2_i32_58, %c0_i32_59] : memref<8x32xf32, #tpu.memory_space<vmem>> -> memref<1x32xf32, #tpu.memory_space<vmem>>
      %79 = tpu.memref_slice %arg13[%c2_i32_56] : memref<8x!tpu.dma_semaphore, #tpu.memory_space<semaphore_mem>> -> memref<1x!tpu.dma_semaphore, #tpu.memory_space<semaphore_mem>>
      %80 = tpu.memref_squeeze %79 : memref<1x!tpu.dma_semaphore, #tpu.memory_space<semaphore_mem>> -> memref<!tpu.dma_semaphore, #tpu.memory_space<semaphore_mem>>
      tpu.wait_dma2 semaphore(%80 : memref<!tpu.dma_semaphore, #tpu.memory_space<semaphore_mem>>) src(%77 : memref<1x32xf32, #tpu.memory_space<any>>) dst(%78 : memref<1x32xf32, #tpu.memory_space<vmem>>)
      %c3_i32_60 = arith.constant 3 : i32
      %c0_i32_61 = arith.constant 0 : i32
      %81 = tpu.memref_slice %arg2[%44, %c0_i32_61] : memref<512x32xf32, #tpu.memory_space<any>> -> memref<1x32xf32, #tpu.memory_space<any>>
      %c3_i32_62 = arith.constant 3 : i32
      %c0_i32_63 = arith.constant 0 : i32
      %82 = tpu.memref_slice %arg9[%c3_i32_62, %c0_i32_63] : memref<8x32xf32, #tpu.memory_space<vmem>> -> memref<1x32xf32, #tpu.memory_space<vmem>>
      %83 = tpu.memref_slice %arg13[%c3_i32_60] : memref<8x!tpu.dma_semaphore, #tpu.memory_space<semaphore_mem>> -> memref<1x!tpu.dma_semaphore, #tpu.memory_space<semaphore_mem>>
      %84 = tpu.memref_squeeze %83 : memref<1x!tpu.dma_semaphore, #tpu.memory_space<semaphore_mem>> -> memref<!tpu.dma_semaphore, #tpu.memory_space<semaphore_mem>>
      tpu.wait_dma2 semaphore(%84 : memref<!tpu.dma_semaphore, #tpu.memory_space<semaphore_mem>>) src(%81 : memref<1x32xf32, #tpu.memory_space<any>>) dst(%82 : memref<1x32xf32, #tpu.memory_space<vmem>>)
      %c4_i32_64 = arith.constant 4 : i32
      %c0_i32_65 = arith.constant 0 : i32
      %85 = tpu.memref_slice %arg2[%49, %c0_i32_65] : memref<512x32xf32, #tpu.memory_space<any>> -> memref<1x32xf32, #tpu.memory_space<any>>
      %c4_i32_66 = arith.constant 4 : i32
      %c0_i32_67 = arith.constant 0 : i32
      %86 = tpu.memref_slice %arg9[%c4_i32_66, %c0_i32_67] : memref<8x32xf32, #tpu.memory_space<vmem>> -> memref<1x32xf32, #tpu.memory_space<vmem>>
      %87 = tpu.memref_slice %arg13[%c4_i32_64] : memref<8x!tpu.dma_semaphore, #tpu.memory_space<semaphore_mem>> -> memref<1x!tpu.dma_semaphore, #tpu.memory_space<semaphore_mem>>
      %88 = tpu.memref_squeeze %87 : memref<1x!tpu.dma_semaphore, #tpu.memory_space<semaphore_mem>> -> memref<!tpu.dma_semaphore, #tpu.memory_space<semaphore_mem>>
      tpu.wait_dma2 semaphore(%88 : memref<!tpu.dma_semaphore, #tpu.memory_space<semaphore_mem>>) src(%85 : memref<1x32xf32, #tpu.memory_space<any>>) dst(%86 : memref<1x32xf32, #tpu.memory_space<vmem>>)
      %c5_i32_68 = arith.constant 5 : i32
      %c0_i32_69 = arith.constant 0 : i32
      %89 = tpu.memref_slice %arg2[%54, %c0_i32_69] : memref<512x32xf32, #tpu.memory_space<any>> -> memref<1x32xf32, #tpu.memory_space<any>>
      %c5_i32_70 = arith.constant 5 : i32
      %c0_i32_71 = arith.constant 0 : i32
      %90 = tpu.memref_slice %arg9[%c5_i32_70, %c0_i32_71] : memref<8x32xf32, #tpu.memory_space<vmem>> -> memref<1x32xf32, #tpu.memory_space<vmem>>
      %91 = tpu.memref_slice %arg13[%c5_i32_68] : memref<8x!tpu.dma_semaphore, #tpu.memory_space<semaphore_mem>> -> memref<1x!tpu.dma_semaphore, #tpu.memory_space<semaphore_mem>>
      %92 = tpu.memref_squeeze %91 : memref<1x!tpu.dma_semaphore, #tpu.memory_space<semaphore_mem>> -> memref<!tpu.dma_semaphore, #tpu.memory_space<semaphore_mem>>
      tpu.wait_dma2 semaphore(%92 : memref<!tpu.dma_semaphore, #tpu.memory_space<semaphore_mem>>) src(%89 : memref<1x32xf32, #tpu.memory_space<any>>) dst(%90 : memref<1x32xf32, #tpu.memory_space<vmem>>)
      %c6_i32_72 = arith.constant 6 : i32
      %c0_i32_73 = arith.constant 0 : i32
      %93 = tpu.memref_slice %arg2[%59, %c0_i32_73] : memref<512x32xf32, #tpu.memory_space<any>> -> memref<1x32xf32, #tpu.memory_space<any>>
      %c6_i32_74 = arith.constant 6 : i32
      %c0_i32_75 = arith.constant 0 : i32
      %94 = tpu.memref_slice %arg9[%c6_i32_74, %c0_i32_75] : memref<8x32xf32, #tpu.memory_space<vmem>> -> memref<1x32xf32, #tpu.memory_space<vmem>>
      %95 = tpu.memref_slice %arg13[%c6_i32_72] : memref<8x!tpu.dma_semaphore, #tpu.memory_space<semaphore_mem>> -> memref<1x!tpu.dma_semaphore, #tpu.memory_space<semaphore_mem>>
      %96 = tpu.memref_squeeze %95 : memref<1x!tpu.dma_semaphore, #tpu.memory_space<semaphore_mem>> -> memref<!tpu.dma_semaphore, #tpu.memory_space<semaphore_mem>>
      tpu.wait_dma2 semaphore(%96 : memref<!tpu.dma_semaphore, #tpu.memory_space<semaphore_mem>>) src(%93 : memref<1x32xf32, #tpu.memory_space<any>>) dst(%94 : memref<1x32xf32, #tpu.memory_space<vmem>>)
      %c7_i32_76 = arith.constant 7 : i32
      %c0_i32_77 = arith.constant 0 : i32
      %97 = tpu.memref_slice %arg2[%64, %c0_i32_77] : memref<512x32xf32, #tpu.memory_space<any>> -> memref<1x32xf32, #tpu.memory_space<any>>
      %c7_i32_78 = arith.constant 7 : i32
      %c0_i32_79 = arith.constant 0 : i32
      %98 = tpu.memref_slice %arg9[%c7_i32_78, %c0_i32_79] : memref<8x32xf32, #tpu.memory_space<vmem>> -> memref<1x32xf32, #tpu.memory_space<vmem>>
      %99 = tpu.memref_slice %arg13[%c7_i32_76] : memref<8x!tpu.dma_semaphore, #tpu.memory_space<semaphore_mem>> -> memref<1x!tpu.dma_semaphore, #tpu.memory_space<semaphore_mem>>
      %100 = tpu.memref_squeeze %99 : memref<1x!tpu.dma_semaphore, #tpu.memory_space<semaphore_mem>> -> memref<!tpu.dma_semaphore, #tpu.memory_space<semaphore_mem>>
      tpu.wait_dma2 semaphore(%100 : memref<!tpu.dma_semaphore, #tpu.memory_space<semaphore_mem>>) src(%97 : memref<1x32xf32, #tpu.memory_space<any>>) dst(%98 : memref<1x32xf32, #tpu.memory_space<vmem>>)
      %c0_80 = arith.constant 0 : index
      %c0_81 = arith.constant 0 : index
      %101 = vector.load %arg4[%c0_80, %c0_81] : memref<1x128xf32, #tpu.memory_space<vmem>>, vector<1x128xf32>
      %c0_82 = arith.constant 0 : index
      %c0_83 = arith.constant 0 : index
      %102 = vector.load %arg9[%c0_82, %c0_83] : memref<8x32xf32, #tpu.memory_space<vmem>>, vector<1x32xf32>
      %103 = arith.truncf %102 : vector<1x32xf32> to vector<1x32xbf16>
      %c0_84 = arith.constant 0 : index
      %c0_85 = arith.constant 0 : index
      %c0_86 = arith.constant 0 : index
      %104 = vector.load %arg3[%c0_84, %c0_85, %c0_86] : memref<8x32x128xbf16, #tpu.memory_space<vmem>>, vector<1x32x128xbf16>
      %105 = vector.shape_cast %104 : vector<1x32x128xbf16> to vector<32x128xbf16>
      %cst_87 = arith.constant dense<0.000000e+00> : vector<1x128xf32>
      %106 = tpu.matmul %103, %105, %cst_87 {dimension_numbers = #tpu.dot_dimension_numbers<[1], [0], [0], [1], [0, 0, 1, 1], [], []>} : vector<1x32xbf16>, vector<32x128xbf16>, vector<1x128xf32> -> vector<1x128xf32>
      %107 = arith.addf %101, %106 : vector<1x128xf32>
      %c1_88 = arith.constant 1 : index
      %c0_89 = arith.constant 0 : index
      %108 = vector.load %arg9[%c1_88, %c0_89] : memref<8x32xf32, #tpu.memory_space<vmem>>, vector<1x32xf32>
      %109 = arith.truncf %108 : vector<1x32xf32> to vector<1x32xbf16>
      %c1_90 = arith.constant 1 : index
      %c0_91 = arith.constant 0 : index
      %c0_92 = arith.constant 0 : index
      %110 = vector.load %arg3[%c1_90, %c0_91, %c0_92] : memref<8x32x128xbf16, #tpu.memory_space<vmem>>, vector<1x32x128xbf16>
      %111 = vector.shape_cast %110 : vector<1x32x128xbf16> to vector<32x128xbf16>
      %cst_93 = arith.constant dense<0.000000e+00> : vector<1x128xf32>
      %112 = tpu.matmul %109, %111, %cst_93 {dimension_numbers = #tpu.dot_dimension_numbers<[1], [0], [0], [1], [0, 0, 1, 1], [], []>} : vector<1x32xbf16>, vector<32x128xbf16>, vector<1x128xf32> -> vector<1x128xf32>
      %113 = arith.addf %107, %112 : vector<1x128xf32>
      %c2_94 = arith.constant 2 : index
      %c0_95 = arith.constant 0 : index
      %114 = vector.load %arg9[%c2_94, %c0_95] : memref<8x32xf32, #tpu.memory_space<vmem>>, vector<1x32xf32>
      %115 = arith.truncf %114 : vector<1x32xf32> to vector<1x32xbf16>
      %c2_96 = arith.constant 2 : index
      %c0_97 = arith.constant 0 : index
      %c0_98 = arith.constant 0 : index
      %116 = vector.load %arg3[%c2_96, %c0_97, %c0_98] : memref<8x32x128xbf16, #tpu.memory_space<vmem>>, vector<1x32x128xbf16>
      %117 = vector.shape_cast %116 : vector<1x32x128xbf16> to vector<32x128xbf16>
      %cst_99 = arith.constant dense<0.000000e+00> : vector<1x128xf32>
      %118 = tpu.matmul %115, %117, %cst_99 {dimension_numbers = #tpu.dot_dimension_numbers<[1], [0], [0], [1], [0, 0, 1, 1], [], []>} : vector<1x32xbf16>, vector<32x128xbf16>, vector<1x128xf32> -> vector<1x128xf32>
      %119 = arith.addf %113, %118 : vector<1x128xf32>
      %c3_100 = arith.constant 3 : index
      %c0_101 = arith.constant 0 : index
      %120 = vector.load %arg9[%c3_100, %c0_101] : memref<8x32xf32, #tpu.memory_space<vmem>>, vector<1x32xf32>
      %121 = arith.truncf %120 : vector<1x32xf32> to vector<1x32xbf16>
      %c3_102 = arith.constant 3 : index
      %c0_103 = arith.constant 0 : index
      %c0_104 = arith.constant 0 : index
      %122 = vector.load %arg3[%c3_102, %c0_103, %c0_104] : memref<8x32x128xbf16, #tpu.memory_space<vmem>>, vector<1x32x128xbf16>
      %123 = vector.shape_cast %122 : vector<1x32x128xbf16> to vector<32x128xbf16>
      %cst_105 = arith.constant dense<0.000000e+00> : vector<1x128xf32>
      %124 = tpu.matmul %121, %123, %cst_105 {dimension_numbers = #tpu.dot_dimension_numbers<[1], [0], [0], [1], [0, 0, 1, 1], [], []>} : vector<1x32xbf16>, vector<32x128xbf16>, vector<1x128xf32> -> vector<1x128xf32>
      %125 = arith.addf %119, %124 : vector<1x128xf32>
      %c4_106 = arith.constant 4 : index
      %c0_107 = arith.constant 0 : index
      %126 = vector.load %arg9[%c4_106, %c0_107] : memref<8x32xf32, #tpu.memory_space<vmem>>, vector<1x32xf32>
      %127 = arith.truncf %126 : vector<1x32xf32> to vector<1x32xbf16>
      %c4_108 = arith.constant 4 : index
      %c0_109 = arith.constant 0 : index
      %c0_110 = arith.constant 0 : index
      %128 = vector.load %arg3[%c4_108, %c0_109, %c0_110] : memref<8x32x128xbf16, #tpu.memory_space<vmem>>, vector<1x32x128xbf16>
      %129 = vector.shape_cast %128 : vector<1x32x128xbf16> to vector<32x128xbf16>
      %cst_111 = arith.constant dense<0.000000e+00> : vector<1x128xf32>
      %130 = tpu.matmul %127, %129, %cst_111 {dimension_numbers = #tpu.dot_dimension_numbers<[1], [0], [0], [1], [0, 0, 1, 1], [], []>} : vector<1x32xbf16>, vector<32x128xbf16>, vector<1x128xf32> -> vector<1x128xf32>
      %131 = arith.addf %125, %130 : vector<1x128xf32>
      %c5_112 = arith.constant 5 : index
      %c0_113 = arith.constant 0 : index
      %132 = vector.load %arg9[%c5_112, %c0_113] : memref<8x32xf32, #tpu.memory_space<vmem>>, vector<1x32xf32>
      %133 = arith.truncf %132 : vector<1x32xf32> to vector<1x32xbf16>
      %c5_114 = arith.constant 5 : index
      %c0_115 = arith.constant 0 : index
      %c0_116 = arith.constant 0 : index
      %134 = vector.load %arg3[%c5_114, %c0_115, %c0_116] : memref<8x32x128xbf16, #tpu.memory_space<vmem>>, vector<1x32x128xbf16>
      %135 = vector.shape_cast %134 : vector<1x32x128xbf16> to vector<32x128xbf16>
      %cst_117 = arith.constant dense<0.000000e+00> : vector<1x128xf32>
      %136 = tpu.matmul %133, %135, %cst_117 {dimension_numbers = #tpu.dot_dimension_numbers<[1], [0], [0], [1], [0, 0, 1, 1], [], []>} : vector<1x32xbf16>, vector<32x128xbf16>, vector<1x128xf32> -> vector<1x128xf32>
      %137 = arith.addf %131, %136 : vector<1x128xf32>
      %c6_118 = arith.constant 6 : index
      %c0_119 = arith.constant 0 : index
      %138 = vector.load %arg9[%c6_118, %c0_119] : memref<8x32xf32, #tpu.memory_space<vmem>>, vector<1x32xf32>
      %139 = arith.truncf %138 : vector<1x32xf32> to vector<1x32xbf16>
      %c6_120 = arith.constant 6 : index
      %c0_121 = arith.constant 0 : index
      %c0_122 = arith.constant 0 : index
      %140 = vector.load %arg3[%c6_120, %c0_121, %c0_122] : memref<8x32x128xbf16, #tpu.memory_space<vmem>>, vector<1x32x128xbf16>
      %141 = vector.shape_cast %140 : vector<1x32x128xbf16> to vector<32x128xbf16>
      %cst_123 = arith.constant dense<0.000000e+00> : vector<1x128xf32>
      %142 = tpu.matmul %139, %141, %cst_123 {dimension_numbers = #tpu.dot_dimension_numbers<[1], [0], [0], [1], [0, 0, 1, 1], [], []>} : vector<1x32xbf16>, vector<32x128xbf16>, vector<1x128xf32> -> vector<1x128xf32>
      %143 = arith.addf %137, %142 : vector<1x128xf32>
      %c7_124 = arith.constant 7 : index
      %c0_125 = arith.constant 0 : index
      %144 = vector.load %arg9[%c7_124, %c0_125] : memref<8x32xf32, #tpu.memory_space<vmem>>, vector<1x32xf32>
      %145 = arith.truncf %144 : vector<1x32xf32> to vector<1x32xbf16>
      %c7_126 = arith.constant 7 : index
      %c0_127 = arith.constant 0 : index
      %c0_128 = arith.constant 0 : index
      %146 = vector.load %arg3[%c7_126, %c0_127, %c0_128] : memref<8x32x128xbf16, #tpu.memory_space<vmem>>, vector<1x32x128xbf16>
      %147 = vector.shape_cast %146 : vector<1x32x128xbf16> to vector<32x128xbf16>
      %cst_129 = arith.constant dense<0.000000e+00> : vector<1x128xf32>
      %148 = tpu.matmul %145, %147, %cst_129 {dimension_numbers = #tpu.dot_dimension_numbers<[1], [0], [0], [1], [0, 0, 1, 1], [], []>} : vector<1x32xbf16>, vector<32x128xbf16>, vector<1x128xf32> -> vector<1x128xf32>
      %149 = arith.addf %143, %148 : vector<1x128xf32>
      %cst_130 = arith.constant 0.000000e+00 : f32
      %150 = vector.broadcast %cst_130 : f32 to vector<1x128xf32>
      %151 = arith.maximumf %149, %150 : vector<1x128xf32>
      %152 = arith.truncf %151 : vector<1x128xf32> to vector<1x128xbf16>
      %c0_131 = arith.constant 0 : index
      %c0_132 = arith.constant 0 : index
      %153 = vector.load %arg10[%c0_131, %c0_132] : memref<1x128xbf16, #tpu.memory_space<vmem>>, vector<1x128xbf16>
      tpu.vector_store %arg10[%c0_131, %c0_132], %152 {strides = array<i32>} : memref<1x128xbf16, #tpu.memory_space<vmem>>, vector<1x128xbf16>,
      %cst_133 = arith.constant 0xFF800000 : f32
      %154 = vector.broadcast %cst_133 : f32 to vector<1x1xf32>
      %c0_134 = arith.constant 0 : index
      %c0_135 = arith.constant 0 : index
      %155 = vector.load %arg11[%c0_134, %c0_135] : memref<1x1xf32, #tpu.memory_space<vmem>>, vector<1x1xf32>
      tpu.vector_store %arg11[%c0_134, %c0_135], %154 {strides = array<i32>} : memref<1x1xf32, #tpu.memory_space<vmem>>, vector<1x1xf32>,
      %cst_136 = arith.constant 0.000000e+00 : f32
      %156 = vector.broadcast %cst_136 : f32 to vector<1x1xf32>
      %c0_137 = arith.constant 0 : index
      %c0_138 = arith.constant 0 : index
      %157 = vector.load %arg12[%c0_137, %c0_138] : memref<1x1xf32, #tpu.memory_space<vmem>>, vector<1x1xf32>
      tpu.vector_store %arg12[%c0_137, %c0_138], %156 {strides = array<i32>} : memref<1x1xf32, #tpu.memory_space<vmem>>, vector<1x1xf32>,
    } else {
    }
    %c0 = arith.constant 0 : index
    %c0_1 = arith.constant 0 : index
    %3 = vector.load %arg10[%c0, %c0_1] : memref<1x128xbf16, #tpu.memory_space<vmem>>, vector<1x128xbf16>
    %c0_2 = arith.constant 0 : index
    %c0_3 = arith.constant 0 : index
    %4 = vector.load %arg5[%c0_2, %c0_3] : memref<128x128xbf16, #tpu.memory_space<vmem>>, vector<128x128xbf16>
    %cst = arith.constant dense<0.000000e+00> : vector<1x128xf32>
    %5 = tpu.matmul %3, %4, %cst {dimension_numbers = #tpu.dot_dimension_numbers<[1], [0], [0], [1], [0, 0, 1, 1], [], []>} : vector<1x128xbf16>, vector<128x128xbf16>, vector<1x128xf32> -> vector<1x128xf32>
    %c0_4 = arith.constant 0 : index
    %c0_5 = arith.constant 0 : index
    %6 = vector.load %arg6[%c0_4, %c0_5] : memref<1x128xf32, #tpu.memory_space<vmem>>, vector<1x128xf32>
    %7 = arith.addf %5, %6 : vector<1x128xf32>
    %c0_6 = arith.constant 0 : index
    %c0_7 = arith.constant 0 : index
    %8 = vector.load %arg7[%c0_6, %c0_7] : memref<1x128xf32, #tpu.memory_space<vmem>>, vector<1x128xf32>
    tpu.vector_store %arg7[%c0_6, %c0_7], %7 {strides = array<i32>} : memref<1x128xf32, #tpu.memory_space<vmem>>, vector<1x128xf32>,
    %cst_8 = arith.constant dense<0xFF800000> : vector<1xf32>
    %9 = vector.multi_reduction <maximumf>, %7, %cst_8 [1] : vector<1x128xf32> to vector<1xf32>
    %10 = vector.shape_cast %9 : vector<1xf32> to vector<1x1xf32>
    %c0_9 = arith.constant 0 : index
    %c0_10 = arith.constant 0 : index
    %11 = vector.load %arg11[%c0_9, %c0_10] : memref<1x1xf32, #tpu.memory_space<vmem>>, vector<1x1xf32>
    %12 = arith.maximumf %11, %10 : vector<1x1xf32>
    %c0_11 = arith.constant 0 : index
    %c0_12 = arith.constant 0 : index
    %13 = vector.load %arg12[%c0_11, %c0_12] : memref<1x1xf32, #tpu.memory_space<vmem>>, vector<1x1xf32>
    %c0_13 = arith.constant 0 : index
    %c0_14 = arith.constant 0 : index
    %14 = vector.load %arg11[%c0_13, %c0_14] : memref<1x1xf32, #tpu.memory_space<vmem>>, vector<1x1xf32>
    %15 = arith.subf %14, %12 : vector<1x1xf32>
    %16 = math.exp %15 : vector<1x1xf32>
    %17 = arith.mulf %13, %16 : vector<1x1xf32>
    %18 = vector.broadcast %12 : vector<1x1xf32> to vector<1x128xf32>
    %19 = arith.subf %7, %18 : vector<1x128xf32>
    %20 = math.exp %19 : vector<1x128xf32>
    %cst_15 = arith.constant dense<0.000000e+00> : vector<1xf32>
    %21 = vector.multi_reduction <add>, %20, %cst_15 [1] : vector<1x128xf32> to vector<1xf32>
    %22 = vector.shape_cast %21 : vector<1xf32> to vector<1x1xf32>
    %23 = arith.addf %17, %22 : vector<1x1xf32>
    %c0_16 = arith.constant 0 : index
    %c0_17 = arith.constant 0 : index
    %24 = vector.load %arg12[%c0_16, %c0_17] : memref<1x1xf32, #tpu.memory_space<vmem>>, vector<1x1xf32>
    tpu.vector_store %arg12[%c0_16, %c0_17], %23 {strides = array<i32>} : memref<1x1xf32, #tpu.memory_space<vmem>>, vector<1x1xf32>,
    %c0_18 = arith.constant 0 : index
    %c0_19 = arith.constant 0 : index
    %25 = vector.load %arg11[%c0_18, %c0_19] : memref<1x1xf32, #tpu.memory_space<vmem>>, vector<1x1xf32>
    tpu.vector_store %arg11[%c0_18, %c0_19], %12 {strides = array<i32>} : memref<1x1xf32, #tpu.memory_space<vmem>>, vector<1x1xf32>,
    %c3_i32 = arith.constant 3 : i32
    %26 = arith.cmpi eq, %arg0, %c3_i32 : i32
    %27 = arith.extui %26 : i1 to i32
    %c0_i32_20 = arith.constant 0 : i32
    %28 = arith.cmpi ne, %27, %c0_i32_20 : i32
    scf.if %28 {
      %c0_21 = arith.constant 0 : index
      %c0_22 = arith.constant 0 : index
      %29 = vector.load %arg11[%c0_21, %c0_22] : memref<1x1xf32, #tpu.memory_space<vmem>>, vector<1x1xf32>
      %c0_23 = arith.constant 0 : index
      %c0_24 = arith.constant 0 : index
      %30 = vector.load %arg12[%c0_23, %c0_24] : memref<1x1xf32, #tpu.memory_space<vmem>>, vector<1x1xf32>
      %31 = math.log %30 : vector<1x1xf32>
      %32 = arith.addf %29, %31 : vector<1x1xf32>
      %c0_25 = arith.constant 0 : index
      %c0_26 = arith.constant 0 : index
      %33 = vector.load %arg8[%c0_25, %c0_26] : memref<1x1xf32, #tpu.memory_space<vmem>>, vector<1x1xf32>
      tpu.vector_store %arg8[%c0_25, %c0_26], %32 {strides = array<i32>} : memref<1x1xf32, #tpu.memory_space<vmem>>, vector<1x1xf32>,
    } else {
    }
    return
  }
  func.func @transform_1(%arg0: i32, %arg1: memref<8xi32, #tpu.memory_space<smem>>) -> (i32, i32, i32) {
    %c0_i32 = arith.constant 0 : i32
    %c0_i32_0 = arith.constant 0 : i32
    %c0_i32_1 = arith.constant 0 : i32
    %c0_i32_2 = arith.constant 0 : i32
    return %c0_i32, %c0_i32_0, %c0_i32_1 : i32, i32, i32
  }
  func.func @transform_2(%arg0: i32, %arg1: memref<8xi32, #tpu.memory_space<smem>>) -> (i32, i32) {
    %c0_i32 = arith.constant 0 : i32
    %c0_i32_0 = arith.constant 0 : i32
    %c0_i32_1 = arith.constant 0 : i32
    return %c0_i32, %c0_i32_0 : i32, i32
  }
  func.func @transform_3(%arg0: i32, %arg1: memref<8xi32, #tpu.memory_space<smem>>) -> (i32, i32) {
    %c0_i32 = arith.constant 0 : i32
    %c0_i32_0 = arith.constant 0 : i32
    return %c0_i32, %arg0 : i32, i32
  }
  func.func @transform_4(%arg0: i32, %arg1: memref<8xi32, #tpu.memory_space<smem>>) -> (i32, i32) {
    %c0_i32 = arith.constant 0 : i32
    %c0_i32_0 = arith.constant 0 : i32
    return %c0_i32, %arg0 : i32, i32
  }
  func.func @transform_5(%arg0: i32, %arg1: memref<8xi32, #tpu.memory_space<smem>>) -> (i32, i32) {
    %c0_i32 = arith.constant 0 : i32
    %c0_i32_0 = arith.constant 0 : i32
    return %c0_i32, %arg0 : i32, i32
  }
  func.func @transform_6(%arg0: i32, %arg1: memref<8xi32, #tpu.memory_space<smem>>) -> (i32, i32) {
    %c0_i32 = arith.constant 0 : i32
    %c0_i32_0 = arith.constant 0 : i32
    %c0_i32_1 = arith.constant 0 : i32
    return %c0_i32, %c0_i32_0 : i32, i32
  }
}

</mosaic_0001>

<llo_original>
// kernel: tpu_custom_call.1
$region0: #{tpu_custom_call.1}
  #allocation0 [shape = 'u32[]', space=smem, size = 0x4, offset = 0x4, fixed_abs, tag = 'smem constant byte address 0x4 - core index']
  #allocation1 [shape = 'u32[72,128]{1,0:T(1,128)}', space=vmem, size = 0x9000, scoped, tag = 'internal scratch']
  #allocation2 [shape = 'f32[8,32]{1,0:T(8,128)}', space=vmem, size = 0x1000, scoped, tag = 'scratch operand']
  #allocation3 [shape = 'bf16[1,128]{1,0:T(2,128)(2,1)}', space=vmem, size = 0x200, scoped, tag = 'scratch operand']
  #allocation4 [shape = 'f32[1,1]{1,0:T(1,128)}', space=vmem, size = 0x200, scoped, tag = 'scratch operand']
  #allocation5 [shape = 'f32[1,1]{1,0:T(1,128)}', space=vmem, size = 0x200, scoped, tag = 'scratch operand']
  #allocation6 [shape = 's32[8]{0}', space=sflag, size = 0x20, scoped, tag = 'scratch operand']
  #allocation7 [shape = 's32[1]{0}', space=sflag, size = 0x4, scoped, tag = 'scoped memory for tpu_custom_call.1']
  #allocation8 [shape = 'u8[512]{0}', space=smem, size = 0x200, scoped, tag = 'prefetched SMEM operand 0']
  #allocation14 [shape = 's32[]', space=sflag, size = 0x4, offset = 0, fixed_abs, tag = 'sflag constant byte address 0x0 - dummy sync flag']
  #allocation15 [shape = 's32[]', space=sflag, size = 0x4, offset = 0, fixed_abs, tag = 'sflag constant byte address 0x0 - dummy sync flag']
  #allocation16 [shape = 's32[]', space=sflag, size = 0x4, offset = 0, fixed_abs, tag = 'sflag constant byte address 0x0 - dummy sync flag']
  #allocation17 [shape = 's32[]', space=sflag, size = 0x4, offset = 0, fixed_abs, tag = 'sflag constant byte address 0x0 - dummy sync flag']
  #allocation18 [shape = 's32[]', space=sflag, size = 0x4, offset = 0, fixed_abs, tag = 'sflag constant byte address 0x0 - dummy sync flag']
  #allocation19 [shape = 's32[]', space=sflag, size = 0x4, offset = 0, fixed_abs, tag = 'sflag constant byte address 0x0 - dummy sync flag']
  #allocation20 [shape = 's32[]', space=sflag, size = 0x4, offset = 0, fixed_abs, tag = 'sflag constant byte address 0x0 - dummy sync flag']
  #allocation21 [shape = 's32[]', space=sflag, size = 0x4, offset = 0, fixed_abs, tag = 'sflag constant byte address 0x0 - dummy sync flag']
  %s0 = inlined_call_operand.vmem [shape: s32[8], index: 0, kind: input, shape index: {}]
  %s1 = inlined_call_operand.vmem [shape: f32[512,32], index: 1, kind: input, shape index: {}]
  %s2 = inlined_call_operand.vmem [shape: bf16[8,32,128], index: 2, kind: input, shape index: {}]
  %s3 = inlined_call_operand.vmem [shape: f32[1,128], index: 3, kind: input, shape index: {}]
  %s4 = inlined_call_operand.vmem [shape: bf16[128,512], index: 4, kind: input, shape index: {}]
  %s5 = inlined_call_operand.vmem [shape: f32[1,512], index: 5, kind: input, shape index: {}]
  %s6 = inlined_call_operand.hbm [shape: f32[1,512], index: 6, kind: output, shape index: {0}]
  %s7 = inlined_call_operand.hbm [shape: f32[1,1], index: 7, kind: output, shape index: {1}]
  %8 = xla_tuple %s6, %s7
  %s9 = sld [smem:[#allocation0]]
  $region346: #{tpu_custom_call.1} parent=0
    _
  %s11 = ssub.s32 1, %s9
  %s12 = scalar_select 0, %s11, %s9
  %s14 = sshll.u32 %s0, 4
  %s15 = int_to_ptr.vmem [resolvable:$true] %s14
  %17 = dma.vmem_to_smem %s15, 16, [#allocation8], [#allocation7]
  %19 = dma.done [#allocation7], 16
  %20 = sfence
  $region1: #{tpu_custom_call.1} parent=0
    #allocation9 [shape = 'u8[65536]{0}', space=vmem, size = 0x10000, scoped, tag = 'input window, operand 4']
    #allocation10 [shape = 'u8[1024]{0}', space=vmem, size = 0x400, scoped, tag = 'output window, operand 0']
    #allocation11 [shape = 's32[2]{0}', space=sflag, size = 0x8, scoped, tag = 'scoped memory for tpu_custom_call.1']
    #allocation12 [shape = 'u8[512]{0}', space=vmem, size = 0x400, scoped, tag = 'output window, operand 1, single buffered']
    #allocation13 [shape = 's32[1]{0}', space=sflag, size = 0x4, scoped, tag = 'scoped memory for tpu_custom_call.1']
    %21 = vsyncpa [#allocation11], 0
    %s22 = scalar_lea.sflag [#allocation11], 1
    %23 = vsyncpa %s22, 0
    %24 = vsyncpa [#allocation13], 0
    loop: start=0, step=1, limit=6
    $region2: #{tpu_custom_call.1} parent=1 // loop_pre_header
      _
    $region3: #{tpu_custom_call.1} parent=1 // loop_header
      %s26 = sphi 0, %s30
      %p27 = scmp.ge.s32.totalorder %s26, 6
      %s34 = sphi 0, %s34
      %s36 = sphi 0, %s34
      %s37 = sphi 0, %s36
      %s51 = sphi 0, %s37
      %s55 = sphi 0, %s55
      %s57 = sphi 0, %s55
      %s58 = sphi 0, %s57
      %s72 = sphi 0, %s58
      %s78 = sphi 0, %s80
      %s81 = sphi 0, %s78
      %s82 = sphi 0, %s81
      %s98 = sphi 0, %s82
      %s104 = sphi 0, %s106
      %s107 = sphi 0, %s104
      %s108 = sphi 0, %s107
      %s124 = sphi 0, %s108
      %s130 = sphi 0, %s132
      %s133 = sphi 0, %s130
      %s134 = sphi 0, %s133
      %s150 = sphi 0, %s134
      %s154 = sphi 0, %s154
      %s156 = sphi 0, %s154
      %s157 = sphi 0, %s156
      %s171 = sphi 0, %s157
    $region4: #{tpu_custom_call.1} parent=1 // loop_header_branch
      %29 = sbr.rel (%p27) target = $region8
    $region5: #{tpu_custom_call.1} parent=1 // loop_body
      %s31 = ssub.s32 %s26, 1
      %s32 = ssub.s32 %s26, 2
      %s33 = sadd.s32 %s26, 1
      %s35 = sadd.s32 %s34, 1
      %p38 = scmp.eq.s32.totalorder %s26, 3
      %p39 = scmp.ne.s32.totalorder %s34, %s36
      %p40 = scmp.eq.s32.totalorder %s26, 0
      %p41 = por %p39, %p40
      %p42 = scmp.ne.s32.totalorder %s34, %s36
      %p43 = scmp.eq.s32.totalorder %s31, 3
      %p44 = por %p42, %p43
      %p45 = scmp.ne.s32.totalorder %s36, %s37
      %p46 = scmp.eq.s32.totalorder %s31, 0
      %p47 = por %p45, %p46
      %p48 = scmp.ne.s32.totalorder %s36, %s37
      %p49 = scmp.eq.s32.totalorder %s32, 3
      %p50 = por %p48, %p49
      %p52 = scmp.ne.s32.totalorder %s37, %s51
      %p53 = scmp.eq.s32.totalorder %s32, 0
      %p54 = por %p52, %p53
      %s56 = sadd.s32 %s55, 1
      %p59 = scmp.eq.s32.totalorder %s26, 3
      %p60 = scmp.ne.s32.totalorder %s55, %s57
      %p61 = scmp.eq.s32.totalorder %s26, 0
      %p62 = por %p60, %p61
      %p63 = scmp.ne.s32.totalorder %s55, %s57
      %p64 = scmp.eq.s32.totalorder %s31, 3
      %p65 = por %p63, %p64
      %p66 = scmp.ne.s32.totalorder %s57, %s58
      %p67 = scmp.eq.s32.totalorder %s31, 0
      %p68 = por %p66, %p67
      %p69 = scmp.ne.s32.totalorder %s57, %s58
      %p70 = scmp.eq.s32.totalorder %s32, 3
      %p71 = por %p69, %p70
      %p73 = scmp.ne.s32.totalorder %s58, %s72
      %p74 = scmp.eq.s32.totalorder %s32, 0
      %p75 = por %p73, %p74
      %s76 = ssub.s32 %s26, %s33
      %p77 = scmp.eq.s32.totalorder %s76, 0
      %s79 = sadd.s32 %s78, 1
      %s80 = scalar_select %p77, %s78, %s79
      %p83 = pneg %p77
      %p84 = scmp.eq.s32.totalorder %s26, 3
      %p85 = por %p83, %p84
      %p86 = scmp.ne.s32.totalorder %s78, %s81
      %p87 = scmp.eq.s32.totalorder %s26, 0
      %p88 = por %p86, %p87
      %p89 = scmp.ne.s32.totalorder %s78, %s81
      %p90 = scmp.eq.s32.totalorder %s31, 3
      %p91 = por %p89, %p90
      %p92 = scmp.ne.s32.totalorder %s81, %s82
      %p93 = scmp.eq.s32.totalorder %s31, 0
      %p94 = por %p92, %p93
      %p95 = scmp.ne.s32.totalorder %s81, %s82
      %p96 = scmp.eq.s32.totalorder %s32, 3
      %p97 = por %p95, %p96
      %p99 = scmp.ne.s32.totalorder %s82, %s98
      %p100 = scmp.eq.s32.totalorder %s32, 0
      %p101 = por %p99, %p100
      %s102 = ssub.s32 %s26, %s33
      %p103 = scmp.eq.s32.totalorder %s102, 0
      %s105 = sadd.s32 %s104, 1
      %s106 = scalar_select %p103, %s104, %s105
      %p109 = pneg %p103
      %p110 = scmp.eq.s32.totalorder %s26, 3
      %p111 = por %p109, %p110
      %p112 = scmp.ne.s32.totalorder %s104, %s107
      %p113 = scmp.eq.s32.totalorder %s26, 0
      %p114 = por %p112, %p113
      %p115 = scmp.ne.s32.totalorder %s104, %s107
      %p116 = scmp.eq.s32.totalorder %s31, 3
      %p117 = por %p115, %p116
      %p118 = scmp.ne.s32.totalorder %s107, %s108
      %p119 = scmp.eq.s32.totalorder %s31, 0
      %p120 = por %p118, %p119
      %p121 = scmp.ne.s32.totalorder %s107, %s108
      %p122 = scmp.eq.s32.totalorder %s32, 3
      %p123 = por %p121, %p122
      %p125 = scmp.ne.s32.totalorder %s108, %s124
      %p126 = scmp.eq.s32.totalorder %s32, 0
      %p127 = por %p125, %p126
      %s128 = ssub.s32 %s26, %s33
      %p129 = scmp.eq.s32.totalorder %s128, 0
      %s131 = sadd.s32 %s130, 1
      %s132 = scalar_select %p129, %s130, %s131
      %p135 = pneg %p129
      %p136 = scmp.eq.s32.totalorder %s26, 3
      %p137 = por %p135, %p136
      %p138 = scmp.ne.s32.totalorder %s130, %s133
      %p139 = scmp.eq.s32.totalorder %s26, 0
      %p140 = por %p138, %p139
      %p141 = scmp.ne.s32.totalorder %s130, %s133
      %p142 = scmp.eq.s32.totalorder %s31, 3
      %p143 = por %p141, %p142
      %p144 = scmp.ne.s32.totalorder %s133, %s134
      %p145 = scmp.eq.s32.totalorder %s31, 0
      %p146 = por %p144, %p145
      %p147 = scmp.ne.s32.totalorder %s133, %s134
      %p148 = scmp.eq.s32.totalorder %s32, 3
      %p149 = por %p147, %p148
      %p151 = scmp.ne.s32.totalorder %s134, %s150
      %p152 = scmp.eq.s32.totalorder %s32, 0
      %p153 = por %p151, %p152
      %s155 = sadd.s32 %s154, 1
      %p158 = scmp.eq.s32.totalorder %s26, 3
      %p159 = scmp.ne.s32.totalorder %s154, %s156
      %p160 = scmp.eq.s32.totalorder %s26, 0
      %p161 = por %p159, %p160
      %p162 = scmp.ne.s32.totalorder %s154, %s156
      %p163 = scmp.eq.s32.totalorder %s31, 3
      %p164 = por %p162, %p163
      %p165 = scmp.ne.s32.totalorder %s156, %s157
      %p166 = scmp.eq.s32.totalorder %s31, 0
      %p167 = por %p165, %p166
      %p168 = scmp.ne.s32.totalorder %s156, %s157
      %p169 = scmp.eq.s32.totalorder %s32, 3
      %p170 = por %p168, %p169
      %p172 = scmp.ne.s32.totalorder %s157, %s171
      %p173 = scmp.eq.s32.totalorder %s32, 0
      %p174 = por %p172, %p173
      %p175 = scmp.le.s32.totalorder 1, %s26
      %p176 = scmp.lt.s32.totalorder %s26, 5
      %p177 = pnand %p175, %p176
      %p178 = pneg %p177
      // Predicated region
      $region9: #{tpu_custom_call.1} parent=5 // pred_check
        _
      $region10: #{tpu_custom_call.1} parent=5 // pred_check_branch
        %180 = sbr.rel (%p177) target = $region12
      $region11: #{tpu_custom_call.1} parent=5 // pred_region
        %s181 = ssub.s32 %s26, 1
        // Predicated region
        $region13: #{tpu_custom_call.1} parent=11 // pred_check
          %p182 = pneg %p47
        $region14: #{tpu_custom_call.1} parent=11 // pred_check_branch
          %184 = sbr.rel (%p182) target = $region16
        $region15: #{tpu_custom_call.1} parent=11 // pred_region
          _
        $region16: #{tpu_custom_call.1} parent=11 // pred_fallthru
          _
        // Predicated region
        $region17: #{tpu_custom_call.1} parent=11 // pred_check
          %p185 = pneg %p68
        $region18: #{tpu_custom_call.1} parent=11 // pred_check_branch
          %187 = sbr.rel (%p185) target = $region20
        $region19: #{tpu_custom_call.1} parent=11 // pred_region
          _
        $region20: #{tpu_custom_call.1} parent=11 // pred_fallthru
          _
      $region12: #{tpu_custom_call.1} parent=5 // pred_fallthru
        _
      %p188 = scmp.lt.s32.totalorder %s26, 4
      // Predicated region
      $region21: #{tpu_custom_call.1} parent=5 // pred_check
        %p189 = pneg %p188
      $region22: #{tpu_custom_call.1} parent=5 // pred_check_branch
        %191 = sbr.rel (%p189) target = $region24
      $region23: #{tpu_custom_call.1} parent=5 // pred_region
        // Predicated region
        $region25: #{tpu_custom_call.1} parent=23 // pred_check
          %p192 = pneg %p88
        $region26: #{tpu_custom_call.1} parent=23 // pred_check_branch
          %194 = sbr.rel (%p192) target = $region28
        $region27: #{tpu_custom_call.1} parent=23 // pred_region
          %s195 = sand.u32 %s78, 1
          %s196 = sand.u32 %s78, 1
          %s197 = smul.addr %s196, 64
          %s198 = scalar_lea.vmem [#allocation9], %s197
          %s199 = smul.addr %s26, 4
          %s200 = scalar_lea.vmem %s4, %s199
          // Predicated region
          $region29: #{tpu_custom_call.1} parent=27 // pred_check
            _
          $region30: #{tpu_custom_call.1} parent=27 // pred_check_branch
            %202 = sbr.rel (0) target = $region32
          $region31: #{tpu_custom_call.1} parent=27 // pred_region
            // Predicated region
            $region33: #{tpu_custom_call.1} parent=31 // pred_check
              _
            $region34: #{tpu_custom_call.1} parent=31 // pred_check_branch
              %204 = sbr.rel target = $region36
            $region35: #{tpu_custom_call.1} parent=31 // pred_region
              // Predicated region
              $region48: #{tpu_custom_call.1} parent=35 // pred_check
                _
              $region49: #{tpu_custom_call.1} parent=35 // pred_check_branch
                %250 = sbr.rel (0) target = $region51
              $region50: #{tpu_custom_call.1} parent=35 // pred_region
                loop: start=0, step=1, limit=1
                $region52: #{tpu_custom_call.1} parent=50 // loop_pre_header
                  _
                $region53: #{tpu_custom_call.1} parent=50 // loop_header
                  %s252 = sphi 0, %s256
                  %p253 = scmp.ge.s32.totalorder %s252, 1
                  %s257 = sphi %s200, %s200
                  %s258 = sphi %s198, %s198
                $region54: #{tpu_custom_call.1} parent=50 // loop_header_branch
                  %255 = sbr.rel (%p253) target = $region58
                $region55: #{tpu_custom_call.1} parent=50 // loop_body
                  _
                $region56: #{tpu_custom_call.1} parent=50 // loop_footer
                  %s256 = sadd.s32 1, %s252
                $region57: #{tpu_custom_call.1} parent=50 // loop_footer_branch
                  %251 = sbr.rel target = $region53
                $region58: #{tpu_custom_call.1} parent=50 // loop_exit
                  _
                %s260 = ssub.s32 16, 1
                loop: start=0, step=1, limit=1
                $region59: #{tpu_custom_call.1} parent=50 // loop_pre_header
                  _
                $region60: #{tpu_custom_call.1} parent=50 // loop_header
                  %s262 = sphi 0, %s266
                  %p263 = scmp.ge.s32.totalorder %s262, 1
                  %s267 = sphi %s200, %s200
                  %s268 = sphi %s198, %s198
                $region61: #{tpu_custom_call.1} parent=50 // loop_header_branch
                  %265 = sbr.rel (%p263) target = $region65
                $region62: #{tpu_custom_call.1} parent=50 // loop_body
                  %v269 = vld [vmem:[%s267] sm:%s260]
                  %270 = vst [vmem:[%s268] sm:%s260] %v269
                  %v271 = vld [vmem:[%s267 + $0x10] sm:%s260]
                  %272 = vst [vmem:[%s268 + $0x4] sm:%s260] %v271
                  %v273 = vld [vmem:[%s267 + $0x20] sm:%s260]
                  %274 = vst [vmem:[%s268 + $0x8] sm:%s260] %v273
                  %v275 = vld [vmem:[%s267 + $0x30] sm:%s260]
                  %276 = vst [vmem:[%s268 + $0xc] sm:%s260] %v275
                  %v277 = vld [vmem:[%s267 + $0x40] sm:%s260]
                  %278 = vst [vmem:[%s268 + $0x10] sm:%s260] %v277
                  %v279 = vld [vmem:[%s267 + $0x50] sm:%s260]
                  %280 = vst [vmem:[%s268 + $0x14] sm:%s260] %v279
                  %v281 = vld [vmem:[%s267 + $0x60] sm:%s260]
                  %282 = vst [vmem:[%s268 + $0x18] sm:%s260] %v281
                  %v283 = vld [vmem:[%s267 + $0x70] sm:%s260]
                  %284 = vst [vmem:[%s268 + $0x1c] sm:%s260] %v283
                  %v285 = vld [vmem:[%s267 + $0x80] sm:%s260]
                  %286 = vst [vmem:[%s268 + $0x20] sm:%s260] %v285
                  %v287 = vld [vmem:[%s267 + $0x90] sm:%s260]
                  %288 = vst [vmem:[%s268 + $0x24] sm:%s260] %v287
                  %v289 = vld [vmem:[%s267 + $0xa0] sm:%s260]
                  %290 = vst [vmem:[%s268 + $0x28] sm:%s260] %v289
                  %v291 = vld [vmem:[%s267 + $0xb0] sm:%s260]
                  %292 = vst [vmem:[%s268 + $0x2c] sm:%s260] %v291
                  %v293 = vld [vmem:[%s267 + $0xc0] sm:%s260]
                  %294 = vst [vmem:[%s268 + $0x30] sm:%s260] %v293
                  %v295 = vld [vmem:[%s267 + $0xd0] sm:%s260]
                  %296 = vst [vmem:[%s268 + $0x34] sm:%s260] %v295
                  %v297 = vld [vmem:[%s267 + $0xe0] sm:%s260]
                  %298 = vst [vmem:[%s268 + $0x38] sm:%s260] %v297
                  %v299 = vld [vmem:[%s267 + $0xf0] sm:%s260]
                  %300 = vst [vmem:[%s268 + $0x3c] sm:%s260] %v299
                $region63: #{tpu_custom_call.1} parent=50 // loop_footer
                  %s266 = sadd.s32 1, %s262
                $region64: #{tpu_custom_call.1} parent=50 // loop_footer_branch
                  %261 = sbr.rel target = $region60
                $region65: #{tpu_custom_call.1} parent=50 // loop_exit
                  _
              $region51: #{tpu_custom_call.1} parent=35 // pred_fallthru
                _
            $region36: #{tpu_custom_call.1} parent=31 // pred_fallthru
              _
            // Predicated region
            $region37: #{tpu_custom_call.1} parent=31 // pred_check
              _
            $region38: #{tpu_custom_call.1} parent=31 // pred_check_branch
              %206 = sbr.rel (0) target = $region40
            $region39: #{tpu_custom_call.1} parent=31 // pred_region
              %s208 = ssub.s32 16, 1
              loop: start=0, step=1, limit=1
              $region41: #{tpu_custom_call.1} parent=39 // loop_pre_header
                _
              $region42: #{tpu_custom_call.1} parent=39 // loop_header
                %s210 = sphi 0, %s214
                %p211 = scmp.ge.s32.totalorder %s210, 1
                %s215 = sphi %s200, %s200
                %s216 = sphi %s198, %s198
              $region43: #{tpu_custom_call.1} parent=39 // loop_header_branch
                %213 = sbr.rel (%p211) target = $region47
              $region44: #{tpu_custom_call.1} parent=39 // loop_body
                %v217 = vld [vmem:[%s215] sm:%s208]
                %218 = vst [vmem:[%s216] sm:%s208] %v217
                %v219 = vld [vmem:[%s215 + $0x10] sm:%s208]
                %220 = vst [vmem:[%s216 + $0x4] sm:%s208] %v219
                %v221 = vld [vmem:[%s215 + $0x20] sm:%s208]
                %222 = vst [vmem:[%s216 + $0x8] sm:%s208] %v221
                %v223 = vld [vmem:[%s215 + $0x30] sm:%s208]
                %224 = vst [vmem:[%s216 + $0xc] sm:%s208] %v223
                %v225 = vld [vmem:[%s215 + $0x40] sm:%s208]
                %226 = vst [vmem:[%s216 + $0x10] sm:%s208] %v225
                %v227 = vld [vmem:[%s215 + $0x50] sm:%s208]
                %228 = vst [vmem:[%s216 + $0x14] sm:%s208] %v227
                %v229 = vld [vmem:[%s215 + $0x60] sm:%s208]
                %230 = vst [vmem:[%s216 + $0x18] sm:%s208] %v229
                %v231 = vld [vmem:[%s215 + $0x70] sm:%s208]
                %232 = vst [vmem:[%s216 + $0x1c] sm:%s208] %v231
                %v233 = vld [vmem:[%s215 + $0x80] sm:%s208]
                %234 = vst [vmem:[%s216 + $0x20] sm:%s208] %v233
                %v235 = vld [vmem:[%s215 + $0x90] sm:%s208]
                %236 = vst [vmem:[%s216 + $0x24] sm:%s208] %v235
                %v237 = vld [vmem:[%s215 + $0xa0] sm:%s208]
                %238 = vst [vmem:[%s216 + $0x28] sm:%s208] %v237
                %v239 = vld [vmem:[%s215 + $0xb0] sm:%s208]
                %240 = vst [vmem:[%s216 + $0x2c] sm:%s208] %v239
                %v241 = vld [vmem:[%s215 + $0xc0] sm:%s208]
                %242 = vst [vmem:[%s216 + $0x30] sm:%s208] %v241
                %v243 = vld [vmem:[%s215 + $0xd0] sm:%s208]
                %244 = vst [vmem:[%s216 + $0x34] sm:%s208] %v243
                %v245 = vld [vmem:[%s215 + $0xe0] sm:%s208]
                %246 = vst [vmem:[%s216 + $0x38] sm:%s208] %v245
                %v247 = vld [vmem:[%s215 + $0xf0] sm:%s208]
                %248 = vst [vmem:[%s216 + $0x3c] sm:%s208] %v247
              $region45: #{tpu_custom_call.1} parent=39 // loop_footer
                %s214 = sadd.s32 1, %s210
              $region46: #{tpu_custom_call.1} parent=39 // loop_footer_branch
                %209 = sbr.rel target = $region42
              $region47: #{tpu_custom_call.1} parent=39 // loop_exit
                _
            $region40: #{tpu_custom_call.1} parent=31 // pred_fallthru
              _
          $region32: #{tpu_custom_call.1} parent=27 // pred_fallthru
            _
          %301 = vnop
        $region28: #{tpu_custom_call.1} parent=23 // pred_fallthru
          _
        // Predicated region
        $region66: #{tpu_custom_call.1} parent=23 // pred_check
          %p302 = pneg %p114
        $region67: #{tpu_custom_call.1} parent=23 // pred_check_branch
          %304 = sbr.rel (%p302) target = $region69
        $region68: #{tpu_custom_call.1} parent=23 // pred_region
          %p305 = scmp.lt.s32.totalorder %s26, 3
          %s306 = scalar_select %p305, %s26, 3
          %s307 = scalar_lea.vmem %s5, %s306
        $region69: #{tpu_custom_call.1} parent=23 // pred_fallthru
          _
      $region24: #{tpu_custom_call.1} parent=5 // pred_fallthru
        _
      %p308 = scmp.le.s32.totalorder 1, %s26
      %p309 = scmp.lt.s32.totalorder %s26, 5
      %p310 = pnand %p308, %p309
      %p311 = pneg %p310
      // Predicated region
      $region70: #{tpu_custom_call.1} parent=5 // pred_check
        _
      $region71: #{tpu_custom_call.1} parent=5 // pred_check_branch
        %313 = sbr.rel (%p310) target = $region73
      $region72: #{tpu_custom_call.1} parent=5 // pred_region
        %s314 = ssub.s32 %s26, 1
        %s315 = sand.u32 %s81, 1
        %s316 = sand.u32 %s81, 1
        %s317 = smul.addr %s316, 64
        %s318 = scalar_lea.vmem [#allocation9], %s317
        // Predicated region
        $region74: #{tpu_custom_call.1} parent=72 // pred_check
          %p319 = pneg %p94
        $region75: #{tpu_custom_call.1} parent=72 // pred_check_branch
          %321 = sbr.rel (%p319) target = $region77
        $region76: #{tpu_custom_call.1} parent=72 // pred_region
          _
        $region77: #{tpu_custom_call.1} parent=72 // pred_fallthru
          _
        %p322 = pneg %p47
        %p323 = pneg %p44
        %p324 = pneg %p68
        %p325 = pneg %p65
        %s326 = sand.u32 %s81, 1
        %s327 = sand.u32 %s81, 1
        %s328 = smul.addr %s327, 64
        %s329 = scalar_lea.vmem [#allocation9], %s328
        %p330 = pneg %p94
        %p331 = pneg %p91
        %p332 = scmp.lt.s32.totalorder %s31, 3
        %s333 = scalar_select %p332, %s31, 3
        %s334 = scalar_lea.vmem %s5, %s333
        %p335 = pneg %p120
        %p336 = pneg %p117
        %p337 = pneg %p146
        %p338 = pneg %p143
        %s339 = sand.u32 %s133, 1
        %s340 = scalar_lea.sflag [#allocation11], %s339
        %s341 = sand.u32 %s133, 1
        %s342 = scalar_lea.vmem [#allocation10], %s341
        %p343 = pneg %p167
        %p344 = pneg %p164
        %p345 = scmp.lt.s32.totalorder %s31, 3
        %s346 = scalar_select %p345, %s31, 3
        %s347 = scalar_lea.vmem %s5, %s346
        %p349 = scmp.eq.s32.totalorder %s31, 0
        // Predicated region
        $region78: #{tpu_custom_call.1} parent=72 // pred_check
          %p350 = pneg %p349
        $region79: #{tpu_custom_call.1} parent=72 // pred_check_branch
          %352 = sbr.rel (%p350) target = $region81
        $region80: #{tpu_custom_call.1} parent=72 // pred_region
          %s353 = sld [smem:[#allocation8]]
          %s354 = scalar_lea.vmem %s1, %s353
          // Predicated region
          $region82: #{tpu_custom_call.1} parent=80 // pred_check
            _
          $region83: #{tpu_custom_call.1} parent=80 // pred_check_branch
            %356 = sbr.rel target = $region85
          $region84: #{tpu_custom_call.1} parent=80 // pred_region
            // Predicated region
            $region97: #{tpu_custom_call.1} parent=84 // pred_check
              _
            $region98: #{tpu_custom_call.1} parent=84 // pred_check_branch
              %372 = sbr.rel (0) target = $region100
            $region99: #{tpu_custom_call.1} parent=84 // pred_region
              %s374 = ssub.s32 2, 1
              loop: start=0, step=1, limit=1
              $region101: #{tpu_custom_call.1} parent=99 // loop_pre_header
                _
              $region102: #{tpu_custom_call.1} parent=99 // loop_header
                %s376 = sphi 0, %s380
                %p377 = scmp.ge.s32.totalorder %s376, 1
                %s381 = sphi %s354, %s354
                %s382 = sphi [#allocation2], [#allocation2]
              $region103: #{tpu_custom_call.1} parent=99 // loop_header_branch
                %379 = sbr.rel (%p377) target = $region107
              $region104: #{tpu_custom_call.1} parent=99 // loop_body
                %v383 = vld [vmem:[%s381] sm:%s374]
                %384 = vst [vmem:[%s382] sm:%s374] %v383
              $region105: #{tpu_custom_call.1} parent=99 // loop_footer
                %s380 = sadd.s32 1, %s376
              $region106: #{tpu_custom_call.1} parent=99 // loop_footer_branch
                %375 = sbr.rel target = $region102
              $region107: #{tpu_custom_call.1} parent=99 // loop_exit
                _
            $region100: #{tpu_custom_call.1} parent=84 // pred_fallthru
              _
          $region85: #{tpu_custom_call.1} parent=80 // pred_fallthru
            _
          // Predicated region
          $region86: #{tpu_custom_call.1} parent=80 // pred_check
            _
          $region87: #{tpu_custom_call.1} parent=80 // pred_check_branch
            %358 = sbr.rel (0) target = $region89
          $region88: #{tpu_custom_call.1} parent=80 // pred_region
            %s360 = ssub.s32 2, 1
            loop: start=0, step=1, limit=1
            $region90: #{tpu_custom_call.1} parent=88 // loop_pre_header
              _
            $region91: #{tpu_custom_call.1} parent=88 // loop_header
              %s362 = sphi 0, %s366
              %p363 = scmp.ge.s32.totalorder %s362, 1
              %s367 = sphi %s354, %s354
              %s368 = sphi [#allocation2], [#allocation2]
            $region92: #{tpu_custom_call.1} parent=88 // loop_header_branch
              %365 = sbr.rel (%p363) target = $region96
            $region93: #{tpu_custom_call.1} parent=88 // loop_body
              %v369 = vld [vmem:[%s367] sm:%s360]
              %370 = vst [vmem:[%s368] sm:%s360] %v369
            $region94: #{tpu_custom_call.1} parent=88 // loop_footer
              %s366 = sadd.s32 1, %s362
            $region95: #{tpu_custom_call.1} parent=88 // loop_footer_branch
              %361 = sbr.rel target = $region91
            $region96: #{tpu_custom_call.1} parent=88 // loop_exit
              _
          $region89: #{tpu_custom_call.1} parent=80 // pred_fallthru
            _
          // Predicated region
          $region108: #{tpu_custom_call.1} parent=80 // pred_check
            _
          $region109: #{tpu_custom_call.1} parent=80 // pred_check_branch
            %387 = sbr.rel (0) target = $region111
          $region110: #{tpu_custom_call.1} parent=80 // pred_region
            %388 = vsyncadd [#allocation6], 16
          $region111: #{tpu_custom_call.1} parent=80 // pred_fallthru
            _
          %s389 = sld [smem:[#allocation8 + $0x1]]
          %s390 = scalar_lea.vmem %s1, %s389
          %s391 = scalar_lea.vmem [#allocation2], 1
          %s392 = scalar_lea.sflag [#allocation6], 1
          // Predicated region
          $region112: #{tpu_custom_call.1} parent=80 // pred_check
            _
          $region113: #{tpu_custom_call.1} parent=80 // pred_check_branch
            %394 = sbr.rel target = $region115
          $region114: #{tpu_custom_call.1} parent=80 // pred_region
            // Predicated region
            $region127: #{tpu_custom_call.1} parent=114 // pred_check
              _
            $region128: #{tpu_custom_call.1} parent=114 // pred_check_branch
              %410 = sbr.rel (0) target = $region130
            $region129: #{tpu_custom_call.1} parent=114 // pred_region
              %s412 = ssub.s32 2, 1
              loop: start=0, step=1, limit=1
              $region131: #{tpu_custom_call.1} parent=129 // loop_pre_header
                _
              $region132: #{tpu_custom_call.1} parent=129 // loop_header
                %s414 = sphi 0, %s418
                %p415 = scmp.ge.s32.totalorder %s414, 1
                %s419 = sphi %s390, %s390
                %s420 = sphi %s391, %s391
              $region133: #{tpu_custom_call.1} parent=129 // loop_header_branch
                %417 = sbr.rel (%p415) target = $region137
              $region134: #{tpu_custom_call.1} parent=129 // loop_body
                %v421 = vld [vmem:[%s419] sm:%s412]
                %422 = vst [vmem:[%s420] sm:%s412] %v421
              $region135: #{tpu_custom_call.1} parent=129 // loop_footer
                %s418 = sadd.s32 1, %s414
              $region136: #{tpu_custom_call.1} parent=129 // loop_footer_branch
                %413 = sbr.rel target = $region132
              $region137: #{tpu_custom_call.1} parent=129 // loop_exit
                _
            $region130: #{tpu_custom_call.1} parent=114 // pred_fallthru
              _
          $region115: #{tpu_custom_call.1} parent=80 // pred_fallthru
            _
          // Predicated region
          $region116: #{tpu_custom_call.1} parent=80 // pred_check
            _
          $region117: #{tpu_custom_call.1} parent=80 // pred_check_branch
            %396 = sbr.rel (0) target = $region119
          $region118: #{tpu_custom_call.1} parent=80 // pred_region
            %s398 = ssub.s32 2, 1
            loop: start=0, step=1, limit=1
            $region120: #{tpu_custom_call.1} parent=118 // loop_pre_header
              _
            $region121: #{tpu_custom_call.1} parent=118 // loop_header
              %s400 = sphi 0, %s404
              %p401 = scmp.ge.s32.totalorder %s400, 1
              %s405 = sphi %s390, %s390
              %s406 = sphi %s391, %s391
            $region122: #{tpu_custom_call.1} parent=118 // loop_header_branch
              %403 = sbr.rel (%p401) target = $region126
            $region123: #{tpu_custom_call.1} parent=118 // loop_body
              %v407 = vld [vmem:[%s405] sm:%s398]
              %408 = vst [vmem:[%s406] sm:%s398] %v407
            $region124: #{tpu_custom_call.1} parent=118 // loop_footer
              %s404 = sadd.s32 1, %s400
            $region125: #{tpu_custom_call.1} parent=118 // loop_footer_branch
              %399 = sbr.rel target = $region121
            $region126: #{tpu_custom_call.1} parent=118 // loop_exit
              _
          $region119: #{tpu_custom_call.1} parent=80 // pred_fallthru
            _
          // Predicated region
          $region138: #{tpu_custom_call.1} parent=80 // pred_check
            _
          $region139: #{tpu_custom_call.1} parent=80 // pred_check_branch
            %425 = sbr.rel (0) target = $region141
          $region140: #{tpu_custom_call.1} parent=80 // pred_region
            %426 = vsyncadd %s392, 16
          $region141: #{tpu_custom_call.1} parent=80 // pred_fallthru
            _
          %s427 = sld [smem:[#allocation8 + $0x2]]
          %s428 = scalar_lea.vmem %s1, %s427
          %s429 = scalar_lea.vmem [#allocation2], 2
          %s430 = scalar_lea.sflag [#allocation6], 2
          // Predicated region
          $region142: #{tpu_custom_call.1} parent=80 // pred_check
            _
          $region143: #{tpu_custom_call.1} parent=80 // pred_check_branch
            %432 = sbr.rel target = $region145
          $region144: #{tpu_custom_call.1} parent=80 // pred_region
            // Predicated region
            $region157: #{tpu_custom_call.1} parent=144 // pred_check
              _
            $region158: #{tpu_custom_call.1} parent=144 // pred_check_branch
              %448 = sbr.rel (0) target = $region160
            $region159: #{tpu_custom_call.1} parent=144 // pred_region
              %s450 = ssub.s32 2, 1
              loop: start=0, step=1, limit=1
              $region161: #{tpu_custom_call.1} parent=159 // loop_pre_header
                _
              $region162: #{tpu_custom_call.1} parent=159 // loop_header
                %s452 = sphi 0, %s456
                %p453 = scmp.ge.s32.totalorder %s452, 1
                %s457 = sphi %s428, %s428
                %s458 = sphi %s429, %s429
              $region163: #{tpu_custom_call.1} parent=159 // loop_header_branch
                %455 = sbr.rel (%p453) target = $region167
              $region164: #{tpu_custom_call.1} parent=159 // loop_body
                %v459 = vld [vmem:[%s457] sm:%s450]
                %460 = vst [vmem:[%s458] sm:%s450] %v459
              $region165: #{tpu_custom_call.1} parent=159 // loop_footer
                %s456 = sadd.s32 1, %s452
              $region166: #{tpu_custom_call.1} parent=159 // loop_footer_branch
                %451 = sbr.rel target = $region162
              $region167: #{tpu_custom_call.1} parent=159 // loop_exit
                _
            $region160: #{tpu_custom_call.1} parent=144 // pred_fallthru
              _
          $region145: #{tpu_custom_call.1} parent=80 // pred_fallthru
            _
          // Predicated region
          $region146: #{tpu_custom_call.1} parent=80 // pred_check
            _
          $region147: #{tpu_custom_call.1} parent=80 // pred_check_branch
            %434 = sbr.rel (0) target = $region149
          $region148: #{tpu_custom_call.1} parent=80 // pred_region
            %s436 = ssub.s32 2, 1
            loop: start=0, step=1, limit=1
            $region150: #{tpu_custom_call.1} parent=148 // loop_pre_header
              _
            $region151: #{tpu_custom_call.1} parent=148 // loop_header
              %s438 = sphi 0, %s442
              %p439 = scmp.ge.s32.totalorder %s438, 1
              %s443 = sphi %s428, %s428
              %s444 = sphi %s429, %s429
            $region152: #{tpu_custom_call.1} parent=148 // loop_header_branch
              %441 = sbr.rel (%p439) target = $region156
            $region153: #{tpu_custom_call.1} parent=148 // loop_body
              %v445 = vld [vmem:[%s443] sm:%s436]
              %446 = vst [vmem:[%s444] sm:%s436] %v445
            $region154: #{tpu_custom_call.1} parent=148 // loop_footer
              %s442 = sadd.s32 1, %s438
            $region155: #{tpu_custom_call.1} parent=148 // loop_footer_branch
              %437 = sbr.rel target = $region151
            $region156: #{tpu_custom_call.1} parent=148 // loop_exit
              _
          $region149: #{tpu_custom_call.1} parent=80 // pred_fallthru
            _
          // Predicated region
          $region168: #{tpu_custom_call.1} parent=80 // pred_check
            _
          $region169: #{tpu_custom_call.1} parent=80 // pred_check_branch
            %463 = sbr.rel (0) target = $region171
          $region170: #{tpu_custom_call.1} parent=80 // pred_region
            %464 = vsyncadd %s430, 16
          $region171: #{tpu_custom_call.1} parent=80 // pred_fallthru
            _
          %s465 = sld [smem:[#allocation8 + $0x3]]
          %s466 = scalar_lea.vmem %s1, %s465
          %s467 = scalar_lea.vmem [#allocation2], 3
          %s468 = scalar_lea.sflag [#allocation6], 3
          // Predicated region
          $region172: #{tpu_custom_call.1} parent=80 // pred_check
            _
          $region173: #{tpu_custom_call.1} parent=80 // pred_check_branch
            %470 = sbr.rel target = $region175
          $region174: #{tpu_custom_call.1} parent=80 // pred_region
            // Predicated region
            $region187: #{tpu_custom_call.1} parent=174 // pred_check
              _
            $region188: #{tpu_custom_call.1} parent=174 // pred_check_branch
              %486 = sbr.rel (0) target = $region190
            $region189: #{tpu_custom_call.1} parent=174 // pred_region
              %s488 = ssub.s32 2, 1
              loop: start=0, step=1, limit=1
              $region191: #{tpu_custom_call.1} parent=189 // loop_pre_header
                _
              $region192: #{tpu_custom_call.1} parent=189 // loop_header
                %s490 = sphi 0, %s494
                %p491 = scmp.ge.s32.totalorder %s490, 1
                %s495 = sphi %s466, %s466
                %s496 = sphi %s467, %s467
              $region193: #{tpu_custom_call.1} parent=189 // loop_header_branch
                %493 = sbr.rel (%p491) target = $region197
              $region194: #{tpu_custom_call.1} parent=189 // loop_body
                %v497 = vld [vmem:[%s495] sm:%s488]
                %498 = vst [vmem:[%s496] sm:%s488] %v497
              $region195: #{tpu_custom_call.1} parent=189 // loop_footer
                %s494 = sadd.s32 1, %s490
              $region196: #{tpu_custom_call.1} parent=189 // loop_footer_branch
                %489 = sbr.rel target = $region192
              $region197: #{tpu_custom_call.1} parent=189 // loop_exit
                _
            $region190: #{tpu_custom_call.1} parent=174 // pred_fallthru
              _
          $region175: #{tpu_custom_call.1} parent=80 // pred_fallthru
            _
          // Predicated region
          $region176: #{tpu_custom_call.1} parent=80 // pred_check
            _
          $region177: #{tpu_custom_call.1} parent=80 // pred_check_branch
            %472 = sbr.rel (0) target = $region179
          $region178: #{tpu_custom_call.1} parent=80 // pred_region
            %s474 = ssub.s32 2, 1
            loop: start=0, step=1, limit=1
            $region180: #{tpu_custom_call.1} parent=178 // loop_pre_header
              _
            $region181: #{tpu_custom_call.1} parent=178 // loop_header
              %s476 = sphi 0, %s480
              %p477 = scmp.ge.s32.totalorder %s476, 1
              %s481 = sphi %s466, %s466
              %s482 = sphi %s467, %s467
            $region182: #{tpu_custom_call.1} parent=178 // loop_header_branch
              %479 = sbr.rel (%p477) target = $region186
            $region183: #{tpu_custom_call.1} parent=178 // loop_body
              %v483 = vld [vmem:[%s481] sm:%s474]
              %484 = vst [vmem:[%s482] sm:%s474] %v483
            $region184: #{tpu_custom_call.1} parent=178 // loop_footer
              %s480 = sadd.s32 1, %s476
            $region185: #{tpu_custom_call.1} parent=178 // loop_footer_branch
              %475 = sbr.rel target = $region181
            $region186: #{tpu_custom_call.1} parent=178 // loop_exit
              _
          $region179: #{tpu_custom_call.1} parent=80 // pred_fallthru
            _
          // Predicated region
          $region198: #{tpu_custom_call.1} parent=80 // pred_check
            _
          $region199: #{tpu_custom_call.1} parent=80 // pred_check_branch
            %501 = sbr.rel (0) target = $region201
          $region200: #{tpu_custom_call.1} parent=80 // pred_region
            %502 = vsyncadd %s468, 16
          $region201: #{tpu_custom_call.1} parent=80 // pred_fallthru
            _
          %s503 = sld [smem:[#allocation8 + $0x4]]
          %s504 = scalar_lea.vmem %s1, %s503
          %s505 = scalar_lea.vmem [#allocation2], 4
          %s506 = scalar_lea.sflag [#allocation6], 4
          // Predicated region
          $region202: #{tpu_custom_call.1} parent=80 // pred_check
            _
          $region203: #{tpu_custom_call.1} parent=80 // pred_check_branch
            %508 = sbr.rel target = $region205
          $region204: #{tpu_custom_call.1} parent=80 // pred_region
            // Predicated region
            $region217: #{tpu_custom_call.1} parent=204 // pred_check
              _
            $region218: #{tpu_custom_call.1} parent=204 // pred_check_branch
              %524 = sbr.rel (0) target = $region220
            $region219: #{tpu_custom_call.1} parent=204 // pred_region
              %s526 = ssub.s32 2, 1
              loop: start=0, step=1, limit=1
              $region221: #{tpu_custom_call.1} parent=219 // loop_pre_header
                _
              $region222: #{tpu_custom_call.1} parent=219 // loop_header
                %s528 = sphi 0, %s532
                %p529 = scmp.ge.s32.totalorder %s528, 1
                %s533 = sphi %s504, %s504
                %s534 = sphi %s505, %s505
              $region223: #{tpu_custom_call.1} parent=219 // loop_header_branch
                %531 = sbr.rel (%p529) target = $region227
              $region224: #{tpu_custom_call.1} parent=219 // loop_body
                %v535 = vld [vmem:[%s533] sm:%s526]
                %536 = vst [vmem:[%s534] sm:%s526] %v535
              $region225: #{tpu_custom_call.1} parent=219 // loop_footer
                %s532 = sadd.s32 1, %s528
              $region226: #{tpu_custom_call.1} parent=219 // loop_footer_branch
                %527 = sbr.rel target = $region222
              $region227: #{tpu_custom_call.1} parent=219 // loop_exit
                _
            $region220: #{tpu_custom_call.1} parent=204 // pred_fallthru
              _
          $region205: #{tpu_custom_call.1} parent=80 // pred_fallthru
            _
          // Predicated region
          $region206: #{tpu_custom_call.1} parent=80 // pred_check
            _
          $region207: #{tpu_custom_call.1} parent=80 // pred_check_branch
            %510 = sbr.rel (0) target = $region209
          $region208: #{tpu_custom_call.1} parent=80 // pred_region
            %s512 = ssub.s32 2, 1
            loop: start=0, step=1, limit=1
            $region210: #{tpu_custom_call.1} parent=208 // loop_pre_header
              _
            $region211: #{tpu_custom_call.1} parent=208 // loop_header
              %s514 = sphi 0, %s518
              %p515 = scmp.ge.s32.totalorder %s514, 1
              %s519 = sphi %s504, %s504
              %s520 = sphi %s505, %s505
            $region212: #{tpu_custom_call.1} parent=208 // loop_header_branch
              %517 = sbr.rel (%p515) target = $region216
            $region213: #{tpu_custom_call.1} parent=208 // loop_body
              %v521 = vld [vmem:[%s519] sm:%s512]
              %522 = vst [vmem:[%s520] sm:%s512] %v521
            $region214: #{tpu_custom_call.1} parent=208 // loop_footer
              %s518 = sadd.s32 1, %s514
            $region215: #{tpu_custom_call.1} parent=208 // loop_footer_branch
              %513 = sbr.rel target = $region211
            $region216: #{tpu_custom_call.1} parent=208 // loop_exit
              _
          $region209: #{tpu_custom_call.1} parent=80 // pred_fallthru
            _
          // Predicated region
          $region228: #{tpu_custom_call.1} parent=80 // pred_check
            _
          $region229: #{tpu_custom_call.1} parent=80 // pred_check_branch
            %539 = sbr.rel (0) target = $region231
          $region230: #{tpu_custom_call.1} parent=80 // pred_region
            %540 = vsyncadd %s506, 16
          $region231: #{tpu_custom_call.1} parent=80 // pred_fallthru
            _
          %s541 = sld [smem:[#allocation8 + $0x5]]
          %s542 = scalar_lea.vmem %s1, %s541
          %s543 = scalar_lea.vmem [#allocation2], 5
          %s544 = scalar_lea.sflag [#allocation6], 5
          // Predicated region
          $region232: #{tpu_custom_call.1} parent=80 // pred_check
            _
          $region233: #{tpu_custom_call.1} parent=80 // pred_check_branch
            %546 = sbr.rel target = $region235
          $region234: #{tpu_custom_call.1} parent=80 // pred_region
            // Predicated region
            $region247: #{tpu_custom_call.1} parent=234 // pred_check
              _
            $region248: #{tpu_custom_call.1} parent=234 // pred_check_branch
              %562 = sbr.rel (0) target = $region250
            $region249: #{tpu_custom_call.1} parent=234 // pred_region
              %s564 = ssub.s32 2, 1
              loop: start=0, step=1, limit=1
              $region251: #{tpu_custom_call.1} parent=249 // loop_pre_header
                _
              $region252: #{tpu_custom_call.1} parent=249 // loop_header
                %s566 = sphi 0, %s570
                %p567 = scmp.ge.s32.totalorder %s566, 1
                %s571 = sphi %s542, %s542
                %s572 = sphi %s543, %s543
              $region253: #{tpu_custom_call.1} parent=249 // loop_header_branch
                %569 = sbr.rel (%p567) target = $region257
              $region254: #{tpu_custom_call.1} parent=249 // loop_body
                %v573 = vld [vmem:[%s571] sm:%s564]
                %574 = vst [vmem:[%s572] sm:%s564] %v573
              $region255: #{tpu_custom_call.1} parent=249 // loop_footer
                %s570 = sadd.s32 1, %s566
              $region256: #{tpu_custom_call.1} parent=249 // loop_footer_branch
                %565 = sbr.rel target = $region252
              $region257: #{tpu_custom_call.1} parent=249 // loop_exit
                _
            $region250: #{tpu_custom_call.1} parent=234 // pred_fallthru
              _
          $region235: #{tpu_custom_call.1} parent=80 // pred_fallthru
            _
          // Predicated region
          $region236: #{tpu_custom_call.1} parent=80 // pred_check
            _
          $region237: #{tpu_custom_call.1} parent=80 // pred_check_branch
            %548 = sbr.rel (0) target = $region239
          $region238: #{tpu_custom_call.1} parent=80 // pred_region
            %s550 = ssub.s32 2, 1
            loop: start=0, step=1, limit=1
            $region240: #{tpu_custom_call.1} parent=238 // loop_pre_header
              _
            $region241: #{tpu_custom_call.1} parent=238 // loop_header
              %s552 = sphi 0, %s556
              %p553 = scmp.ge.s32.totalorder %s552, 1
              %s557 = sphi %s542, %s542
              %s558 = sphi %s543, %s543
            $region242: #{tpu_custom_call.1} parent=238 // loop_header_branch
              %555 = sbr.rel (%p553) target = $region246
            $region243: #{tpu_custom_call.1} parent=238 // loop_body
              %v559 = vld [vmem:[%s557] sm:%s550]
              %560 = vst [vmem:[%s558] sm:%s550] %v559
            $region244: #{tpu_custom_call.1} parent=238 // loop_footer
              %s556 = sadd.s32 1, %s552
            $region245: #{tpu_custom_call.1} parent=238 // loop_footer_branch
              %551 = sbr.rel target = $region241
            $region246: #{tpu_custom_call.1} parent=238 // loop_exit
              _
          $region239: #{tpu_custom_call.1} parent=80 // pred_fallthru
            _
          // Predicated region
          $region258: #{tpu_custom_call.1} parent=80 // pred_check
            _
          $region259: #{tpu_custom_call.1} parent=80 // pred_check_branch
            %577 = sbr.rel (0) target = $region261
          $region260: #{tpu_custom_call.1} parent=80 // pred_region
            %578 = vsyncadd %s544, 16
          $region261: #{tpu_custom_call.1} parent=80 // pred_fallthru
            _
          %s579 = sld [smem:[#allocation8 + $0x6]]
          %s580 = scalar_lea.vmem %s1, %s579
          %s581 = scalar_lea.vmem [#allocation2], 6
          %s582 = scalar_lea.sflag [#allocation6], 6
          // Predicated region
          $region262: #{tpu_custom_call.1} parent=80 // pred_check
            _
          $region263: #{tpu_custom_call.1} parent=80 // pred_check_branch
            %584 = sbr.rel target = $region265
          $region264: #{tpu_custom_call.1} parent=80 // pred_region
            // Predicated region
            $region277: #{tpu_custom_call.1} parent=264 // pred_check
              _
            $region278: #{tpu_custom_call.1} parent=264 // pred_check_branch
              %600 = sbr.rel (0) target = $region280
            $region279: #{tpu_custom_call.1} parent=264 // pred_region
              %s602 = ssub.s32 2, 1
              loop: start=0, step=1, limit=1
              $region281: #{tpu_custom_call.1} parent=279 // loop_pre_header
                _
              $region282: #{tpu_custom_call.1} parent=279 // loop_header
                %s604 = sphi 0, %s608
                %p605 = scmp.ge.s32.totalorder %s604, 1
                %s609 = sphi %s580, %s580
                %s610 = sphi %s581, %s581
              $region283: #{tpu_custom_call.1} parent=279 // loop_header_branch
                %607 = sbr.rel (%p605) target = $region287
              $region284: #{tpu_custom_call.1} parent=279 // loop_body
                %v611 = vld [vmem:[%s609] sm:%s602]
                %612 = vst [vmem:[%s610] sm:%s602] %v611
              $region285: #{tpu_custom_call.1} parent=279 // loop_footer
                %s608 = sadd.s32 1, %s604
              $region286: #{tpu_custom_call.1} parent=279 // loop_footer_branch
                %603 = sbr.rel target = $region282
              $region287: #{tpu_custom_call.1} parent=279 // loop_exit
                _
            $region280: #{tpu_custom_call.1} parent=264 // pred_fallthru
              _
          $region265: #{tpu_custom_call.1} parent=80 // pred_fallthru
            _
          // Predicated region
          $region266: #{tpu_custom_call.1} parent=80 // pred_check
            _
          $region267: #{tpu_custom_call.1} parent=80 // pred_check_branch
            %586 = sbr.rel (0) target = $region269
          $region268: #{tpu_custom_call.1} parent=80 // pred_region
            %s588 = ssub.s32 2, 1
            loop: start=0, step=1, limit=1
            $region270: #{tpu_custom_call.1} parent=268 // loop_pre_header
              _
            $region271: #{tpu_custom_call.1} parent=268 // loop_header
              %s590 = sphi 0, %s594
              %p591 = scmp.ge.s32.totalorder %s590, 1
              %s595 = sphi %s580, %s580
              %s596 = sphi %s581, %s581
            $region272: #{tpu_custom_call.1} parent=268 // loop_header_branch
              %593 = sbr.rel (%p591) target = $region276
            $region273: #{tpu_custom_call.1} parent=268 // loop_body
              %v597 = vld [vmem:[%s595] sm:%s588]
              %598 = vst [vmem:[%s596] sm:%s588] %v597
            $region274: #{tpu_custom_call.1} parent=268 // loop_footer
              %s594 = sadd.s32 1, %s590
            $region275: #{tpu_custom_call.1} parent=268 // loop_footer_branch
              %589 = sbr.rel target = $region271
            $region276: #{tpu_custom_call.1} parent=268 // loop_exit
              _
          $region269: #{tpu_custom_call.1} parent=80 // pred_fallthru
            _
          // Predicated region
          $region288: #{tpu_custom_call.1} parent=80 // pred_check
            _
          $region289: #{tpu_custom_call.1} parent=80 // pred_check_branch
            %615 = sbr.rel (0) target = $region291
          $region290: #{tpu_custom_call.1} parent=80 // pred_region
            %616 = vsyncadd %s582, 16
          $region291: #{tpu_custom_call.1} parent=80 // pred_fallthru
            _
          %s617 = sld [smem:[#allocation8 + $0x7]]
          %s618 = scalar_lea.vmem %s1, %s617
          %s619 = scalar_lea.vmem [#allocation2], 7
          %s620 = scalar_lea.sflag [#allocation6], 7
          // Predicated region
          $region292: #{tpu_custom_call.1} parent=80 // pred_check
            _
          $region293: #{tpu_custom_call.1} parent=80 // pred_check_branch
            %622 = sbr.rel target = $region295
          $region294: #{tpu_custom_call.1} parent=80 // pred_region
            // Predicated region
            $region307: #{tpu_custom_call.1} parent=294 // pred_check
              _
            $region308: #{tpu_custom_call.1} parent=294 // pred_check_branch
              %638 = sbr.rel (0) target = $region310
            $region309: #{tpu_custom_call.1} parent=294 // pred_region
              %s640 = ssub.s32 2, 1
              loop: start=0, step=1, limit=1
              $region311: #{tpu_custom_call.1} parent=309 // loop_pre_header
                _
              $region312: #{tpu_custom_call.1} parent=309 // loop_header
                %s642 = sphi 0, %s646
                %p643 = scmp.ge.s32.totalorder %s642, 1
                %s647 = sphi %s618, %s618
                %s648 = sphi %s619, %s619
              $region313: #{tpu_custom_call.1} parent=309 // loop_header_branch
                %645 = sbr.rel (%p643) target = $region317
              $region314: #{tpu_custom_call.1} parent=309 // loop_body
                %v649 = vld [vmem:[%s647] sm:%s640]
                %650 = vst [vmem:[%s648] sm:%s640] %v649
              $region315: #{tpu_custom_call.1} parent=309 // loop_footer
                %s646 = sadd.s32 1, %s642
              $region316: #{tpu_custom_call.1} parent=309 // loop_footer_branch
                %641 = sbr.rel target = $region312
              $region317: #{tpu_custom_call.1} parent=309 // loop_exit
                _
            $region310: #{tpu_custom_call.1} parent=294 // pred_fallthru
              _
          $region295: #{tpu_custom_call.1} parent=80 // pred_fallthru
            _
          // Predicated region
          $region296: #{tpu_custom_call.1} parent=80 // pred_check
            _
          $region297: #{tpu_custom_call.1} parent=80 // pred_check_branch
            %624 = sbr.rel (0) target = $region299
          $region298: #{tpu_custom_call.1} parent=80 // pred_region
            %s626 = ssub.s32 2, 1
            loop: start=0, step=1, limit=1
            $region300: #{tpu_custom_call.1} parent=298 // loop_pre_header
              _
            $region301: #{tpu_custom_call.1} parent=298 // loop_header
              %s628 = sphi 0, %s632
              %p629 = scmp.ge.s32.totalorder %s628, 1
              %s633 = sphi %s618, %s618
              %s634 = sphi %s619, %s619
            $region302: #{tpu_custom_call.1} parent=298 // loop_header_branch
              %631 = sbr.rel (%p629) target = $region306
            $region303: #{tpu_custom_call.1} parent=298 // loop_body
              %v635 = vld [vmem:[%s633] sm:%s626]
              %636 = vst [vmem:[%s634] sm:%s626] %v635
            $region304: #{tpu_custom_call.1} parent=298 // loop_footer
              %s632 = sadd.s32 1, %s628
            $region305: #{tpu_custom_call.1} parent=298 // loop_footer_branch
              %627 = sbr.rel target = $region301
            $region306: #{tpu_custom_call.1} parent=298 // loop_exit
              _
          $region299: #{tpu_custom_call.1} parent=80 // pred_fallthru
            _
          // Predicated region
          $region318: #{tpu_custom_call.1} parent=80 // pred_check
            _
          $region319: #{tpu_custom_call.1} parent=80 // pred_check_branch
            %653 = sbr.rel (0) target = $region321
          $region320: #{tpu_custom_call.1} parent=80 // pred_region
            %654 = vsyncadd %s620, 16
          $region321: #{tpu_custom_call.1} parent=80 // pred_fallthru
            _
          %s655 = smul.u32 1, 1
          %s656 = sshll.u32 %s655, 4
          %657 = dma.done [#allocation6], %s656
          %s658 = sshll.u32 %s655, 4
          %659 = dma.done %s392, %s658
          %s660 = sshll.u32 %s655, 4
          %661 = dma.done %s430, %s660
          %s662 = sshll.u32 %s655, 4
          %663 = dma.done %s468, %s662
          %s664 = sshll.u32 %s655, 4
          %665 = dma.done %s506, %s664
          %s666 = sshll.u32 %s655, 4
          %667 = dma.done %s544, %s666
          %s668 = sshll.u32 %s655, 4
          %669 = dma.done %s582, %s668
          %s670 = sshll.u32 %s655, 4
          %671 = dma.done %s620, %s670
          %v672 = vld [vmem:[%s3] sm:$0x1]
          %v673 = vld [vmem:[#allocation2] sm:$0x1]
          %v674 = vpack.c.bf16 %v673, %v673
          %v675 = vld [vmem:[%s2] sm:$0xf]
          %v676 = vld [vmem:[%s2 + $0x4] sm:$0xf]
          %v677 = vld [vmem:[%s2 + $0x8] sm:$0xf]
          %v678 = vld [vmem:[%s2 + $0xc] sm:$0xf]
          %v683 = vunpack.c.l.b16 %v675
          %v684 = vunpack.c.l.b16 %v676
          %v685 = vunpack.c.l.b16 %v677
          %v686 = vunpack.c.l.b16 %v678
          %v687 = vpack.c.b16 %v684, %v683
          %v688 = vpack.c.b16 %v686, %v685
          %vm691 = vcmask 261120
          %v693 = vsel %vm691, %v674, 0
          %695 = vmatpush.bf16.msra.mxu0 0
          %696 = vmatpush.bf16.msra.mxu0 0
          %697 = vmatpush.bf16.msra.mxu0 0
          %698 = vmatpush.bf16.msra.mxu0 0
          %699 = vmatpush.bf16.msra.mxu0 0
          %700 = vmatpush.bf16.msra.mxu0 0
          %701 = vmatpush.bf16.msra.mxu0 %v688
          %702 = vmatpush.bf16.msra.mxu0 %v687
          %703 = vmatmul.bf16.gmra.mxu0 %v693
          %v704 = vpop.f32.mrf.mxu0
          %v705 = vadd.f32 0.0, %v704
          %v706 = vpop.f32.mrf.mxu0
          %707 = vdwg.mxu0
          %v708 = vadd.f32 %v672, %v705
          %v709 = vld [vmem:[#allocation2 + $0x1] sm:$0x1]
          %v710 = vpack.c.bf16 %v709, %v709
          %s711 = scalar_lea.vmem %s2, 16
          %v712 = vld [vmem:[%s711] sm:$0xf]
          %v713 = vld [vmem:[%s711 + $0x4] sm:$0xf]
          %v714 = vld [vmem:[%s711 + $0x8] sm:$0xf]
          %v715 = vld [vmem:[%s711 + $0xc] sm:$0xf]
          %v720 = vunpack.c.l.b16 %v712
          %v721 = vunpack.c.l.b16 %v713
          %v722 = vunpack.c.l.b16 %v714
          %v723 = vunpack.c.l.b16 %v715
          %v724 = vpack.c.b16 %v721, %v720
          %v725 = vpack.c.b16 %v723, %v722
          %v729 = vsel %vm691, %v710, 0
          %731 = vmatpush.bf16.msra.mxu0 0
          %732 = vmatpush.bf16.msra.mxu0 0
          %733 = vmatpush.bf16.msra.mxu0 0
          %734 = vmatpush.bf16.msra.mxu0 0
          %735 = vmatpush.bf16.msra.mxu0 0
          %736 = vmatpush.bf16.msra.mxu0 0
          %737 = vmatpush.bf16.msra.mxu0 %v725
          %738 = vmatpush.bf16.msra.mxu0 %v724
          %739 = vmatmul.bf16.gmra.mxu0 %v729
          %v740 = vpop.f32.mrf.mxu0
          %v741 = vadd.f32 0.0, %v740
          %v742 = vpop.f32.mrf.mxu0
          %743 = vdwg.mxu0
          %v744 = vadd.f32 %v708, %v741
          %v745 = vld [vmem:[#allocation2 + $0x2] sm:$0x1]
          %v746 = vpack.c.bf16 %v745, %v745
          %s747 = scalar_lea.vmem %s2, 32
          %v748 = vld [vmem:[%s747] sm:$0xf]
          %v749 = vld [vmem:[%s747 + $0x4] sm:$0xf]
          %v750 = vld [vmem:[%s747 + $0x8] sm:$0xf]
          %v751 = vld [vmem:[%s747 + $0xc] sm:$0xf]
          %v756 = vunpack.c.l.b16 %v748
          %v757 = vunpack.c.l.b16 %v749
          %v758 = vunpack.c.l.b16 %v750
          %v759 = vunpack.c.l.b16 %v751
          %v760 = vpack.c.b16 %v757, %v756
          %v761 = vpack.c.b16 %v759, %v758
          %v765 = vsel %vm691, %v746, 0
          %767 = vmatpush.bf16.msra.mxu0 0
          %768 = vmatpush.bf16.msra.mxu0 0
          %769 = vmatpush.bf16.msra.mxu0 0
          %770 = vmatpush.bf16.msra.mxu0 0
          %771 = vmatpush.bf16.msra.mxu0 0
          %772 = vmatpush.bf16.msra.mxu0 0
          %773 = vmatpush.bf16.msra.mxu0 %v761
          %774 = vmatpush.bf16.msra.mxu0 %v760
          %775 = vmatmul.bf16.gmra.mxu0 %v765
          %v776 = vpop.f32.mrf.mxu0
          %v777 = vadd.f32 0.0, %v776
          %v778 = vpop.f32.mrf.mxu0
          %779 = vdwg.mxu0
          %v780 = vadd.f32 %v744, %v777
          %v781 = vld [vmem:[#allocation2 + $0x3] sm:$0x1]
          %v782 = vpack.c.bf16 %v781, %v781
          %s783 = scalar_lea.vmem %s2, 48
          %v784 = vld [vmem:[%s783] sm:$0xf]
          %v785 = vld [vmem:[%s783 + $0x4] sm:$0xf]
          %v786 = vld [vmem:[%s783 + $0x8] sm:$0xf]
          %v787 = vld [vmem:[%s783 + $0xc] sm:$0xf]
          %v792 = vunpack.c.l.b16 %v784
          %v793 = vunpack.c.l.b16 %v785
          %v794 = vunpack.c.l.b16 %v786
          %v795 = vunpack.c.l.b16 %v787
          %v796 = vpack.c.b16 %v793, %v792
          %v797 = vpack.c.b16 %v795, %v794
          %v801 = vsel %vm691, %v782, 0
          %803 = vmatpush.bf16.msra.mxu0 0
          %804 = vmatpush.bf16.msra.mxu0 0
          %805 = vmatpush.bf16.msra.mxu0 0
          %806 = vmatpush.bf16.msra.mxu0 0
          %807 = vmatpush.bf16.msra.mxu0 0
          %808 = vmatpush.bf16.msra.mxu0 0
          %809 = vmatpush.bf16.msra.mxu0 %v797
          %810 = vmatpush.bf16.msra.mxu0 %v796
          %811 = vmatmul.bf16.gmra.mxu0 %v801
          %v812 = vpop.f32.mrf.mxu0
          %v813 = vadd.f32 0.0, %v812
          %v814 = vpop.f32.mrf.mxu0
          %815 = vdwg.mxu0
          %v816 = vadd.f32 %v780, %v813
          %v817 = vld [vmem:[#allocation2 + $0x4] sm:$0x1]
          %v818 = vpack.c.bf16 %v817, %v817
          %s819 = scalar_lea.vmem %s2, 64
          %v820 = vld [vmem:[%s819] sm:$0xf]
          %v821 = vld [vmem:[%s819 + $0x4] sm:$0xf]
          %v822 = vld [vmem:[%s819 + $0x8] sm:$0xf]
          %v823 = vld [vmem:[%s819 + $0xc] sm:$0xf]
          %v828 = vunpack.c.l.b16 %v820
          %v829 = vunpack.c.l.b16 %v821
          %v830 = vunpack.c.l.b16 %v822
          %v831 = vunpack.c.l.b16 %v823
          %v832 = vpack.c.b16 %v829, %v828
          %v833 = vpack.c.b16 %v831, %v830
          %v837 = vsel %vm691, %v818, 0
          %839 = vmatpush.bf16.msra.mxu0 0
          %840 = vmatpush.bf16.msra.mxu0 0
          %841 = vmatpush.bf16.msra.mxu0 0
          %842 = vmatpush.bf16.msra.mxu0 0
          %843 = vmatpush.bf16.msra.mxu0 0
          %844 = vmatpush.bf16.msra.mxu0 0
          %845 = vmatpush.bf16.msra.mxu0 %v833
          %846 = vmatpush.bf16.msra.mxu0 %v832
          %847 = vmatmul.bf16.gmra.mxu0 %v837
          %v848 = vpop.f32.mrf.mxu0
          %v849 = vadd.f32 0.0, %v848
          %v850 = vpop.f32.mrf.mxu0
          %851 = vdwg.mxu0
          %v852 = vadd.f32 %v816, %v849
          %v853 = vld [vmem:[#allocation2 + $0x5] sm:$0x1]
          %v854 = vpack.c.bf16 %v853, %v853
          %s855 = scalar_lea.vmem %s2, 80
          %v856 = vld [vmem:[%s855] sm:$0xf]
          %v857 = vld [vmem:[%s855 + $0x4] sm:$0xf]
          %v858 = vld [vmem:[%s855 + $0x8] sm:$0xf]
          %v859 = vld [vmem:[%s855 + $0xc] sm:$0xf]
          %v864 = vunpack.c.l.b16 %v856
          %v865 = vunpack.c.l.b16 %v857
          %v866 = vunpack.c.l.b16 %v858
          %v867 = vunpack.c.l.b16 %v859
          %v868 = vpack.c.b16 %v865, %v864
          %v869 = vpack.c.b16 %v867, %v866
          %v873 = vsel %vm691, %v854, 0
          %875 = vmatpush.bf16.msra.mxu0 0
          %876 = vmatpush.bf16.msra.mxu0 0
          %877 = vmatpush.bf16.msra.mxu0 0
          %878 = vmatpush.bf16.msra.mxu0 0
          %879 = vmatpush.bf16.msra.mxu0 0
          %880 = vmatpush.bf16.msra.mxu0 0
          %881 = vmatpush.bf16.msra.mxu0 %v869
          %882 = vmatpush.bf16.msra.mxu0 %v868
          %883 = vmatmul.bf16.gmra.mxu0 %v873
          %v884 = vpop.f32.mrf.mxu0
          %v885 = vadd.f32 0.0, %v884
          %v886 = vpop.f32.mrf.mxu0
          %887 = vdwg.mxu0
          %v888 = vadd.f32 %v852, %v885
          %v889 = vld [vmem:[#allocation2 + $0x6] sm:$0x1]
          %v890 = vpack.c.bf16 %v889, %v889
          %s891 = scalar_lea.vmem %s2, 96
          %v892 = vld [vmem:[%s891] sm:$0xf]
          %v893 = vld [vmem:[%s891 + $0x4] sm:$0xf]
          %v894 = vld [vmem:[%s891 + $0x8] sm:$0xf]
          %v895 = vld [vmem:[%s891 + $0xc] sm:$0xf]
          %v900 = vunpack.c.l.b16 %v892
          %v901 = vunpack.c.l.b16 %v893
          %v902 = vunpack.c.l.b16 %v894
          %v903 = vunpack.c.l.b16 %v895
          %v904 = vpack.c.b16 %v901, %v900
          %v905 = vpack.c.b16 %v903, %v902
          %v909 = vsel %vm691, %v890, 0
          %911 = vmatpush.bf16.msra.mxu0 0
          %912 = vmatpush.bf16.msra.mxu0 0
          %913 = vmatpush.bf16.msra.mxu0 0
          %914 = vmatpush.bf16.msra.mxu0 0
          %915 = vmatpush.bf16.msra.mxu0 0
          %916 = vmatpush.bf16.msra.mxu0 0
          %917 = vmatpush.bf16.msra.mxu0 %v905
          %918 = vmatpush.bf16.msra.mxu0 %v904
          %919 = vmatmul.bf16.gmra.mxu0 %v909
          %v920 = vpop.f32.mrf.mxu0
          %v921 = vadd.f32 0.0, %v920
          %v922 = vpop.f32.mrf.mxu0
          %923 = vdwg.mxu0
          %v924 = vadd.f32 %v888, %v921
          %v925 = vld [vmem:[#allocation2 + $0x7] sm:$0x1]
          %v926 = vpack.c.bf16 %v925, %v925
          %s927 = scalar_lea.vmem %s2, 112
          %v928 = vld [vmem:[%s927] sm:$0xf]
          %v929 = vld [vmem:[%s927 + $0x4] sm:$0xf]
          %v930 = vld [vmem:[%s927 + $0x8] sm:$0xf]
          %v931 = vld [vmem:[%s927 + $0xc] sm:$0xf]
          %v936 = vunpack.c.l.b16 %v928
          %v937 = vunpack.c.l.b16 %v929
          %v938 = vunpack.c.l.b16 %v930
          %v939 = vunpack.c.l.b16 %v931
          %v940 = vpack.c.b16 %v937, %v936
          %v941 = vpack.c.b16 %v939, %v938
          %v945 = vsel %vm691, %v926, 0
          %947 = vmatpush.bf16.msra.mxu0 0
          %948 = vmatpush.bf16.msra.mxu0 0
          %949 = vmatpush.bf16.msra.mxu0 0
          %950 = vmatpush.bf16.msra.mxu0 0
          %951 = vmatpush.bf16.msra.mxu0 0
          %952 = vmatpush.bf16.msra.mxu0 0
          %953 = vmatpush.bf16.msra.mxu0 %v941
          %954 = vmatpush.bf16.msra.mxu0 %v940
          %955 = vmatmul.bf16.gmra.mxu0 %v945
          %v956 = vpop.f32.mrf.mxu0
          %v957 = vadd.f32 0.0, %v956
          %v958 = vpop.f32.mrf.mxu0
          %959 = vdwg.mxu0
          %v960 = vadd.f32 %v924, %v957
          %v961 = vmax.f32 %v960, 0.0
          %v962 = vpack.c.bf16 %v961, %v961
          %vm963 = vcmask 1040384
          %vm964 = vsmask.f32 256
          %vm965 = vmand %vm963, %vm964
          %v966 = vld [vmem:[#allocation3] sm:$0x1]
          %v967 = vsel %vm965, %v962, %v966
          %968 = vst [vmem:[#allocation3] sm:$0x1] %v967
          %vm969 = vcmask 0
          %970 = vst.msk [vmem:[#allocation4] sm:$0x1] %vm969, -inf
          %971 = vst.msk [vmem:[#allocation5] sm:$0x1] %vm969, 0.0
        $region81: #{tpu_custom_call.1} parent=72 // pred_fallthru
          _
        %v972 = vld [vmem:[#allocation3] sm:$0x1]
        %v973 = vld [vmem:[%s318] sm:$0xf]
        %v974 = vld [vmem:[%s318 + $0x4] sm:$0xf]
        %v975 = vld [vmem:[%s318 + $0x8] sm:$0xf]
        %v976 = vld [vmem:[%s318 + $0xc] sm:$0xf]
        %v977 = vld [vmem:[%s318 + $0x10] sm:$0xf]
        %v978 = vld [vmem:[%s318 + $0x14] sm:$0xf]
        %v979 = vld [vmem:[%s318 + $0x18] sm:$0xf]
        %v980 = vld [vmem:[%s318 + $0x1c] sm:$0xf]
        %v981 = vld [vmem:[%s318 + $0x20] sm:$0xf]
        %v982 = vld [vmem:[%s318 + $0x24] sm:$0xf]
        %v983 = vld [vmem:[%s318 + $0x28] sm:$0xf]
        %v984 = vld [vmem:[%s318 + $0x2c] sm:$0xf]
        %v985 = vld [vmem:[%s318 + $0x30] sm:$0xf]
        %v986 = vld [vmem:[%s318 + $0x34] sm:$0xf]
        %v987 = vld [vmem:[%s318 + $0x38] sm:$0xf]
        %v988 = vld [vmem:[%s318 + $0x3c] sm:$0xf]
        %v989 = vld [vmem:[%s347] sm:$0x1]
        %v1006 = vunpack.c.l.b16 %v973
        %v1007 = vunpack.c.l.b16 %v974
        %v1008 = vunpack.c.l.b16 %v975
        %v1009 = vunpack.c.l.b16 %v976
        %v1010 = vunpack.c.l.b16 %v977
        %v1011 = vunpack.c.l.b16 %v978
        %v1012 = vunpack.c.l.b16 %v979
        %v1013 = vunpack.c.l.b16 %v980
        %v1014 = vunpack.c.l.b16 %v981
        %v1015 = vunpack.c.l.b16 %v982
        %v1016 = vunpack.c.l.b16 %v983
        %v1017 = vunpack.c.l.b16 %v984
        %v1018 = vunpack.c.l.b16 %v985
        %v1019 = vunpack.c.l.b16 %v986
        %v1020 = vunpack.c.l.b16 %v987
        %v1021 = vunpack.c.l.b16 %v988
        %v1022 = vpack.c.b16 %v1007, %v1006
        %v1023 = vpack.c.b16 %v1009, %v1008
        %v1024 = vpack.c.b16 %v1011, %v1010
        %v1025 = vpack.c.b16 %v1013, %v1012
        %v1026 = vpack.c.b16 %v1015, %v1014
        %v1027 = vpack.c.b16 %v1017, %v1016
        %v1028 = vpack.c.b16 %v1019, %v1018
        %v1029 = vpack.c.b16 %v1021, %v1020
        %1038 = vmatpush.bf16.msra.mxu0 %v1029
        %1039 = vmatpush.bf16.msra.mxu0 %v1028
        %1040 = vmatpush.bf16.msra.mxu0 %v1027
        %1041 = vmatpush.bf16.msra.mxu0 %v1026
        %1042 = vmatpush.bf16.msra.mxu0 %v1025
        %1043 = vmatpush.bf16.msra.mxu0 %v1024
        %1044 = vmatpush.bf16.msra.mxu0 %v1023
        %1045 = vmatpush.bf16.msra.mxu0 %v1022
        %1046 = vmatmul.bf16.gmra.mxu0 %v972
        %v1047 = vpop.f32.mrf.mxu0
        %v1048 = vadd.f32 %v989, %v1047
        %v1049 = vpop.f32.mrf.mxu0
        %1050 = vdwg.mxu0
        %1051 = vst [vmem:[%s342] sm:$0x1] %v1048
        %vm1052 = vcmask 1040384
        %v1053 = vsel %vm1052, %v1048, -inf
        %1054 = vmax.xlane.f32.xlu0 %v1053
        %v1055 = vpop.xlane.xlu0 %1054
        %v1056 = vld [vmem:[#allocation4] sm:$0x1]
        %v1057 = vmax.f32 %v1056, %v1055
        %v1058 = vld [vmem:[#allocation5] sm:$0x1]
        %v1059 = vsub.f32 %v1056, %v1057
        %v1060 = vmul.f32 %v1059, 1.442695
        %v1061 = vpow.pop %v1060
        %v1062 = vmul.f32 %v1058, %v1061
        %1064 = vset.pattern.permute.xlu0 0
        %1065 = vperm.xlu0 %1064, %v1057
        %v1066 = vpop.permute.xlu0 %1065
        %v1068 = vperm.slane %v1066, 0
        %v1069 = vsub.f32 %v1048, %v1068
        %v1070 = vmul.f32 %v1069, 1.442695
        %v1071 = vpow.pop %v1070
        %v1072 = vsel %vm1052, %v1071, 0.0
        %1073 = vadd.xlane.f32.xlu0 %v1072
        %v1074 = vpop.xlane.xlu0 %1073
        %v1075 = vadd.f32 %v1062, %v1074
        %vm1076 = vcmask 0
        %1077 = vst.msk [vmem:[#allocation5] sm:$0x1] %vm1076, %v1075
        %1078 = vst.msk [vmem:[#allocation4] sm:$0x1] %vm1076, %v1057
        %p1079 = scmp.eq.s32.totalorder %s31, 3
        // Predicated region
        $region322: #{tpu_custom_call.1} parent=72 // pred_check
          %p1080 = pneg %p1079
        $region323: #{tpu_custom_call.1} parent=72 // pred_check_branch
          %1082 = sbr.rel (%p1080) target = $region325
        $region324: #{tpu_custom_call.1} parent=72 // pred_region
          %v1083 = vld [vmem:[#allocation4] sm:$0x1]
          %v1084 = vld [vmem:[#allocation5] sm:$0x1]
          %v1085 = vlog2.pop %v1084
          %v1086 = vmul.f32 %v1085, 0.6931472
          %v1087 = vadd.f32 %v1083, %v1086
          %1088 = vst.msk [vmem:[#allocation12] sm:$0x1] %vm1076, %v1087
        $region325: #{tpu_custom_call.1} parent=72 // pred_fallthru
          _
        %s1089 = sand.u32 %s133, 1
        %s1090 = scalar_lea.sflag [#allocation11], %s1089
        %s1091 = sand.u32 %s133, 1
        %s1092 = scalar_lea.vmem [#allocation10], %s1091
        // Predicated region
        $region326: #{tpu_custom_call.1} parent=72 // pred_check
          %p1093 = pneg %p143
        $region327: #{tpu_custom_call.1} parent=72 // pred_check_branch
          %1095 = sbr.rel (%p1093) target = $region329
        $region328: #{tpu_custom_call.1} parent=72 // pred_region
          %1097 = vsyncadd %s1090, 0
          %s1098 = scalar_lea.hbm %s6, %s31
          %s1100 = sshll.u32 %s1092, 4
          %s1101 = int_to_ptr.vmem [resolvable:$true] %s1100
          %s1102 = sshll.u32 %s1098, 4
          %s1103 = int_to_ptr.hbm [resolvable:$true] %s1102
          %1105 = dma.vmem_to_hbm [thread:$0]  %s1101, 16, %s1103, %s1090
        $region329: #{tpu_custom_call.1} parent=72 // pred_fallthru
          _
        // Predicated region
        $region330: #{tpu_custom_call.1} parent=72 // pred_check
          %p1106 = pneg %p164
        $region331: #{tpu_custom_call.1} parent=72 // pred_check_branch
          %1108 = sbr.rel (%p1106) target = $region333
        $region332: #{tpu_custom_call.1} parent=72 // pred_region
          %1110 = vsyncadd [#allocation13], 0
          %s1112 = sshll.u32 [#allocation12], 4
          %s1113 = int_to_ptr.vmem [resolvable:$true] %s1112
          %s1114 = sshll.u32 %s7, 4
          %s1115 = int_to_ptr.hbm [resolvable:$true] %s1114
          %1117 = dma.vmem_to_hbm [thread:$0]  %s1113, 16, %s1115, [#allocation13]
        $region333: #{tpu_custom_call.1} parent=72 // pred_fallthru
          _
        // Predicated region
        $region334: #{tpu_custom_call.1} parent=72 // pred_check
          %p1118 = pneg %p164
        $region335: #{tpu_custom_call.1} parent=72 // pred_check_branch
          %1120 = sbr.rel (%p1118) target = $region337
        $region336: #{tpu_custom_call.1} parent=72 // pred_region
          %1122 = dma.done [#allocation13], 16
        $region337: #{tpu_custom_call.1} parent=72 // pred_fallthru
          _
      $region73: #{tpu_custom_call.1} parent=5 // pred_fallthru
        _
      %p1123 = scmp.le.s32.totalorder 2, %s26
      // Predicated region
      $region338: #{tpu_custom_call.1} parent=5 // pred_check
        %p1124 = pneg %p1123
      $region339: #{tpu_custom_call.1} parent=5 // pred_check_branch
        %1126 = sbr.rel (%p1124) target = $region341
      $region340: #{tpu_custom_call.1} parent=5 // pred_region
        %s1127 = ssub.s32 %s26, 2
        // Predicated region
        $region342: #{tpu_custom_call.1} parent=340 // pred_check
          %p1128 = pneg %p149
        $region343: #{tpu_custom_call.1} parent=340 // pred_check_branch
          %1130 = sbr.rel (%p1128) target = $region345
        $region344: #{tpu_custom_call.1} parent=340 // pred_region
          %s1131 = sand.u32 %s134, 1
          %s1132 = scalar_lea.sflag [#allocation11], %s1131
          %s1133 = sand.u32 %s134, 1
          %s1134 = scalar_lea.vmem [#allocation10], %s1133
          %1136 = dma.done %s1132, 16
        $region345: #{tpu_custom_call.1} parent=340 // pred_fallthru
          _
      $region341: #{tpu_custom_call.1} parent=5 // pred_fallthru
        _
    $region6: #{tpu_custom_call.1} parent=1 // loop_footer
      %s30 = sadd.s32 1, %s26
    $region7: #{tpu_custom_call.1} parent=1 // loop_footer_branch
      %25 = sbr.rel target = $region3
    $region8: #{tpu_custom_call.1} parent=1 // loop_exit
      _
    %1137 = vsyncpa [#allocation11], 1
    %s1138 = scalar_lea.sflag [#allocation11], 1
    %1139 = vsyncpa %s1138, 1
    %1140 = vsyncpa [#allocation13], 1
  %1141 = vsyncmov [#allocation6]
  %s1142 = vpop.sfrf %1141
  %p1143 = scmp.eq.s32.totalorder %s1142, 0
  %p1144 = pneg %p1143
  %1146 = shalt.err (%p1144)
  %s1147 = scalar_lea.sflag [#allocation6], 1
  %1148 = vsyncmov %s1147
  %s1149 = vpop.sfrf %1148
  %p1150 = scmp.eq.s32.totalorder %s1149, 0
  %p1151 = pneg %p1150
  %1153 = shalt.err (%p1151)
  %s1154 = scalar_lea.sflag [#allocation6], 2
  %1155 = vsyncmov %s1154
  %s1156 = vpop.sfrf %1155
  %p1157 = scmp.eq.s32.totalorder %s1156, 0
  %p1158 = pneg %p1157
  %1160 = shalt.err (%p1158)
  %s1161 = scalar_lea.sflag [#allocation6], 3
  %1162 = vsyncmov %s1161
  %s1163 = vpop.sfrf %1162
  %p1164 = scmp.eq.s32.totalorder %s1163, 0
  %p1165 = pneg %p1164
  %1167 = shalt.err (%p1165)
  %s1168 = scalar_lea.sflag [#allocation6], 4
  %1169 = vsyncmov %s1168
  %s1170 = vpop.sfrf %1169
  %p1171 = scmp.eq.s32.totalorder %s1170, 0
  %p1172 = pneg %p1171
  %1174 = shalt.err (%p1172)
  %s1175 = scalar_lea.sflag [#allocation6], 5
  %1176 = vsyncmov %s1175
  %s1177 = vpop.sfrf %1176
  %p1178 = scmp.eq.s32.totalorder %s1177, 0
  %p1179 = pneg %p1178
  %1181 = shalt.err (%p1179)
  %s1182 = scalar_lea.sflag [#allocation6], 6
  %1183 = vsyncmov %s1182
  %s1184 = vpop.sfrf %1183
  %p1185 = scmp.eq.s32.totalorder %s1184, 0
  %p1186 = pneg %p1185
  %1188 = shalt.err (%p1186)
  %s1189 = scalar_lea.sflag [#allocation6], 7
  %1190 = vsyncmov %s1189
  %s1191 = vpop.sfrf %1190
  %p1192 = scmp.eq.s32.totalorder %s1191, 0
  %p1193 = pneg %p1192
  %1195 = shalt.err (%p1193)

</llo_original>
